<compile_context>
chip_gen: v5e
topology: v5e:2x2
jax: 0.10.0
libtpu: 0.0.40
codegen_flags: <defaults>
</compile_context>

<pallas_src>
import functools

import jax
import jax.numpy as jnp
from jax.experimental import pallas as pl
from jax.experimental.pallas import tpu as pltpu


def _round_up(x, m):
    return (x + m - 1) // m * m


# ----------------------------------------------------------------------------
# Kernels: tiled matmul + bias + activation (row-major and transposed layouts).
# ----------------------------------------------------------------------------
def _mm_bias_act_kernel(x_ref, w_ref, b_ref, o_ref, *, act):
    """x: (TM, K), w: (K, C), b: (1, C) f32, o: (TM, C)."""
    y = jnp.dot(x_ref[...], w_ref[...], preferred_element_type=jnp.float32)
    y = y + b_ref[...]
    if act == "relu":
        y = jnp.maximum(y, 0.0)
    elif act == "tanh":
        y = jnp.tanh(y)
    o_ref[...] = y.astype(o_ref.dtype)


def _mm_t_bias_act_kernel(w_ref, x_ref, b_ref, o_ref, *, act):
    """Lane-dense variant: w: (C, K), x: (K, TN), b: (C, 1) f32, o: (C, TN)."""
    y = jnp.dot(w_ref[...], x_ref[...], preferred_element_type=jnp.float32)
    y = y + b_ref[...]
    if act == "relu":
        y = jnp.maximum(y, 0.0)
    elif act == "tanh":
        y = jnp.tanh(y)
    o_ref[...] = y.astype(o_ref.dtype)


def _matmul_bias_act(x2d, w2d, bias, *, act, out_dtype, tm=512):
    """(M, K) @ (K, C) + bias, activation; M tiled over a parallel grid."""
    M, K = x2d.shape
    C = w2d.shape[1]
    TM = min(_round_up(M, 8), tm)
    Mp = _round_up(M, TM)
    if Mp != M:
        x2d = jnp.pad(x2d, ((0, Mp - M), (0, 0)))
    b2 = bias.reshape(1, C).astype(jnp.float32)
    y = pl.pallas_call(
        functools.partial(_mm_bias_act_kernel, act=act),
        out_shape=jax.ShapeDtypeStruct((Mp, C), out_dtype),
        grid=(Mp // TM,),
        in_specs=[
            pl.BlockSpec((TM, K), lambda i: (i, 0)),
            pl.BlockSpec((K, C), lambda i: (0, 0)),
            pl.BlockSpec((1, C), lambda i: (0, 0)),
        ],
        out_specs=pl.BlockSpec((TM, C), lambda i: (i, 0)),
        compiler_params=pltpu.CompilerParams(
            dimension_semantics=("parallel",)),
    )(x2d, w2d, b2)
    return y[:M] if Mp != M else y


def _matmul_t_bias_act(w2d, x2d, bias, *, act, out_dtype, tn=512):
    """(C, K) @ (K, M) + bias, activation; M (pixels, lane dim) tiled."""
    C, K = w2d.shape
    M = x2d.shape[1]
    TN = min(_round_up(M, 128), tn)
    Mp = _round_up(M, TN)
    if Mp != M:
        x2d = jnp.pad(x2d, ((0, 0), (0, Mp - M)))
    b2 = bias.reshape(C, 1).astype(jnp.float32)
    y = pl.pallas_call(
        functools.partial(_mm_t_bias_act_kernel, act=act),
        out_shape=jax.ShapeDtypeStruct((C, Mp), out_dtype),
        grid=(Mp // TN,),
        in_specs=[
            pl.BlockSpec((C, K), lambda i: (0, 0)),
            pl.BlockSpec((K, TN), lambda i: (0, i)),
            pl.BlockSpec((C, 1), lambda i: (0, 0)),
        ],
        out_specs=pl.BlockSpec((C, TN), lambda i: (0, i)),
        compiler_params=pltpu.CompilerParams(
            dimension_semantics=("parallel",)),
    )(w2d, x2d, b2)
    return y[:, :M] if Mp != M else y


# ----------------------------------------------------------------------------
# Wrapper-side im2col (3x3 zero-padded patches, shared by all 4 parities).
# ----------------------------------------------------------------------------
def _im2col3x3(x_nhwc):
    """(N, H, W, C) -> (N*H*W, 9*C), patch channel order (u, v, c)."""
    N, H, W, C = x_nhwc.shape
    xp = jnp.pad(x_nhwc, ((0, 0), (1, 1), (1, 1), (0, 0)))
    cols = [xp[:, u:u + H, v:v + W, :] for u in range(3) for v in range(3)]
    return jnp.concatenate(cols, axis=-1).reshape(N * H * W, 9 * C)


def _im2col3x3_chan_major(x_nhwc):
    """(N, H, W, C) -> (9*C, N*H*W) for the transposed (lane-dense) matmul."""
    N, H, W, C = x_nhwc.shape
    xp = jnp.pad(x_nhwc, ((0, 0), (1, 1), (1, 1), (0, 0)))
    cols = [xp[:, u:u + H, v:v + W, :] for u in range(3) for v in range(3)]
    pat = jnp.stack(cols, axis=0)                    # (9, N, H, W, C)
    pat = jnp.transpose(pat, (0, 4, 1, 2, 3))        # (9, C, N, H, W)
    return pat.reshape(9 * C, N * H * W)


def _fold_parity_weight(w_pt, scale):
    """(C_in, C_out, 4, 4) + BN scale -> (9*C_in, 4*C_out) f32.

    out[n, 2q+dh, 2r+dw, co] = sum_{a,b in {0,1}}
        x[n, q+dh+a-1, r+dw+b-1, :] @ w[:, co, 3-dh-2a, 3-dw-2b]
    so patch tap (u, v) = (dh+a, dw+b) of the 3x3 zero-padded patch feeds
    parity (dh, dw) with kernel tap (3-dh-2a, 3-dw-2b).
    """
    C_in, C_out = w_pt.shape[0], w_pt.shape[1]
    ws = w_pt.astype(jnp.float32) * scale[None, :, None, None]
    wc = jnp.zeros((3, 3, C_in, 2, 2, C_out), jnp.float32)
    for dh in range(2):
        for dw in range(2):
            for a in range(2):
                for b in range(2):
                    wc = wc.at[dh + a, dw + b, :, dh, dw, :].set(
                        ws[:, :, 3 - dh - 2 * a, 3 - dw - 2 * b])
    return wc.reshape(9 * C_in, 4 * C_out)


# ----------------------------------------------------------------------------
# Layers.
# ----------------------------------------------------------------------------
def first_layer(z_nchw, w_pt, scale, bias, *, compute_dtype):
    """ConvTranspose2d(nz, C1, 4, 1, 0) on 1x1 input == one matmul. -> NHWC."""
    N = z_nchw.shape[0]
    nz, C1 = w_pt.shape[0], w_pt.shape[1]
    z2 = z_nchw.reshape(N, nz)
    w1 = (jnp.transpose(w_pt, (0, 2, 3, 1)).astype(jnp.float32)
          * scale[None, None, None, :]).reshape(nz, 16 * C1)
    b1 = jnp.tile(bias, 16)                          # columns ordered (kh,kw,c)
    y = _matmul_bias_act(z2.astype(compute_dtype), w1.astype(compute_dtype),
                         b1, act="relu", out_dtype=compute_dtype)
    return y.reshape(N, 4, 4, C1)


def up_layer(x_nhwc, w_pt, scale, bias, *, act, compute_dtype):
    """ConvTranspose2d(4, stride=2, pad=1) + folded BN + act, NHWC in/out."""
    N, H, W, C_in = x_nhwc.shape
    C_out = w_pt.shape[1]
    wc = _fold_parity_weight(w_pt, scale).astype(compute_dtype)
    b4 = jnp.tile(bias, 4)                           # columns ordered (p, c)
    patches = _im2col3x3(x_nhwc).astype(compute_dtype)
    y = _matmul_bias_act(patches, wc, b4, act=act, out_dtype=compute_dtype)
    # Interleave parities: (N,H,W,2,2,C) -> (N,H,2,W,2,C) -> (N,2H,2W,C).
    y = y.reshape(N, H, W, 2, 2, C_out)
    y = jnp.transpose(y, (0, 1, 3, 2, 4, 5)).reshape(N, 2 * H, 2 * W, C_out)
    return y


def up_layer_final_nchw(x_nhwc, w_pt, scale, bias, *, act, compute_dtype,
                        out_dtype=jnp.float32):
    """Final tiny-C_out layer: transposed matmul (pixels in lanes) -> NCHW."""
    N, H, W, C_in = x_nhwc.shape
    C_out = w_pt.shape[1]
    wct = _fold_parity_weight(w_pt, scale).T.astype(compute_dtype)  # (4C, 9Cin)
    b4 = jnp.tile(bias, 4)
    xt = _im2col3x3_chan_major(x_nhwc).astype(compute_dtype)        # (9Cin, M)
    y = _matmul_t_bias_act(wct, xt, b4, act=act, out_dtype=out_dtype)
    # (4*C_out, N*H*W) -> (dh,dw,c,n,q,r) -> (N, C, 2H, 2W)  (NCHW for free).
    y = y.reshape(2, 2, C_out, N, H, W)
    y = jnp.transpose(y, (3, 2, 4, 0, 5, 1)).reshape(N, C_out, 2 * H, 2 * W)
    return y


def generator_forward(z_nchw, params, *, compute_dtype=jnp.bfloat16):
    """params: list of (conv_t_weight (C_in,C_out,4,4), bn_scale, bn_bias)."""
    (w0, s0, b0), (w1, s1, b1), (w2, s2, b2), (w3, s3, b3), (w4, s4, b4) = params
    x = first_layer(z_nchw, w0, s0, b0, compute_dtype=compute_dtype)
    x = up_layer(x, w1, s1, b1, act="relu", compute_dtype=compute_dtype)
    x = up_layer(x, w2, s2, b2, act="relu", compute_dtype=compute_dtype)
    x = up_layer(x, w3, s3, b3, act="relu", compute_dtype=compute_dtype)
    return up_layer_final_nchw(x, w4, s4, b4, act="tanh",
                               compute_dtype=compute_dtype,
                               out_dtype=jnp.float32)


# ----------------------------------------------------------------------------
# Deterministic synthetic parameters (DCGAN-style N(0, 0.02) weights).
# ----------------------------------------------------------------------------
def init_params(key, nz, ngf, nc):
    chans = [(nz, ngf * 8), (ngf * 8, ngf * 4), (ngf * 4, ngf * 2),
             (ngf * 2, ngf), (ngf, nc)]
    params = []
    for i, (cin, cout) in enumerate(chans):
        key, k1, k2, k3, k4, k5 = jax.random.split(key, 6)
        w = 0.02 * jax.random.normal(k1, (cin, cout, 4, 4), jnp.float32)
        if i < len(chans) - 1:  # BN after every layer except the last (Tanh)
            gamma = 1.0 + 0.02 * jax.random.normal(k2, (cout,), jnp.float32)
            beta = 0.02 * jax.random.normal(k3, (cout,), jnp.float32)
            r_mean = 0.02 * jax.random.normal(k4, (cout,), jnp.float32)
            r_var = 1.0 + 0.1 * jnp.abs(jax.random.normal(k5, (cout,), jnp.float32))
            scale = gamma / jnp.sqrt(r_var + 1e-5)
            bias = beta - r_mean * scale
        else:
            scale = jnp.ones((cout,), jnp.float32)
            bias = jnp.zeros((cout,), jnp.float32)
        params.append((w, scale, bias))
    return params


# Layer configs (stride, padding, activation) for the pure-JAX reference.
_LAYER_CFG = [(1, 0, "relu"), (2, 1, "relu"), (2, 1, "relu"),
              (2, 1, "relu"), (2, 1, "tanh")]


def reference_forward(z_nchw, params):
    x = jnp.transpose(z_nchw, (0, 2, 3, 1))
    for (stride, pad, act), (w, s, b) in zip(_LAYER_CFG, params):
        K = w.shape[2]
        w_hwio = jnp.transpose(w[:, :, ::-1, ::-1], (2, 3, 0, 1))
        y = jax.lax.conv_general_dilated(
            x, w_hwio,
            window_strides=(1, 1),
            padding=[(K - 1 - pad, K - 1 - pad)] * 2,
            lhs_dilation=(stride, stride),
            dimension_numbers=("NHWC", "HWIO", "NHWC"),
            precision=jax.lax.Precision.HIGHEST,
        )
        y = y * s + b
        x = jnp.maximum(y, 0.0) if act == "relu" else jnp.tanh(y)
    return jnp.transpose(x, (0, 3, 1, 2))


if __name__ == "__main__":
    N, nz, ngf, nc = 2, 16, 8, 3

    key = jax.random.PRNGKey(0)
    kz, kp = jax.random.split(key)
    z = jax.random.normal(kz, (N, nz, 1, 1), jnp.float32)   # PyTorch NCHW latent
    params = init_params(kp, nz, ngf, nc)

    ref = reference_forward(z, params)

    # Correctness check: f32 compute path, tight tolerance.
    fwd_f32 = jax.jit(functools.partial(generator_forward,
                                        compute_dtype=jnp.float32))
    out_f32 = jax.block_until_ready(fwd_f32(z, params))
    assert out_f32.shape == (N, nc, 64, 64), out_f32.shape
    err_f32 = float(jnp.max(jnp.abs(out_f32 - ref)))
    assert err_f32 < 1e-4, f"f32 path mismatch vs reference, max abs err={err_f32}"

    # Performance path: bf16 operands, f32 accumulation + epilogue.
    fwd_bf16 = jax.jit(functools.partial(generator_forward,
                                         compute_dtype=jnp.bfloat16))
    out_bf16 = jax.block_until_ready(fwd_bf16(z, params))
    assert out_bf16.shape == (N, nc, 64, 64), out_bf16.shape
    err_bf16 = float(jnp.max(jnp.abs(out_bf16 - ref)))
    assert err_bf16 < 1e-2, f"bf16 path mismatch vs reference, max abs err={err_bf16}"

    print("KERNEL_OK")
</pallas_src>

<mosaic_0001>
module attributes {stable_mosaic.version = 11 : i64} {
  func.func @_mm_bias_act_kernel(%arg0: i32, %arg1: memref<8x16xf32, #tpu.memory_space<vmem>>, %arg2: memref<16x1024xf32, #tpu.memory_space<vmem>>, %arg3: memref<1x1024xf32, #tpu.memory_space<vmem>>, %arg4: memref<8x1024xf32, #tpu.memory_space<vmem>>) attributes {dimension_semantics = [#tpu.dimension_semantics<parallel>], iteration_bounds = array<i64: 1>, scalar_prefetch = 0 : i64, scratch_operands = 0 : i64, tpu.core_type = #tpu.core_type<tc>, window_params = [{transform_indices = @transform_0, window_bounds = array<i64: 8, 16>}, {pipeline_mode = #tpu.pipeline_mode<synchronous>, transform_indices = @transform_1, window_bounds = array<i64: 16, 1024>}, {pipeline_mode = #tpu.pipeline_mode<synchronous>, transform_indices = @transform_2, window_bounds = array<i64: 1, 1024>}, {transform_indices = @transform_3, window_bounds = array<i64: 8, 1024>}]} {
    %c0 = arith.constant 0 : index
    %c0_0 = arith.constant 0 : index
    %0 = vector.load %arg1[%c0, %c0_0] : memref<8x16xf32, #tpu.memory_space<vmem>>, vector<8x16xf32>
    %c0_1 = arith.constant 0 : index
    %c0_2 = arith.constant 0 : index
    %1 = vector.load %arg2[%c0_1, %c0_2] : memref<16x1024xf32, #tpu.memory_space<vmem>>, vector<16x1024xf32>
    %cst = arith.constant dense<0.000000e+00> : vector<8x1024xf32>
    %2 = tpu.matmul %0, %1, %cst {dimension_numbers = #tpu.dot_dimension_numbers<[1], [0], [0], [1], [0, 0, 1, 1], [], []>} : vector<8x16xf32>, vector<16x1024xf32>, vector<8x1024xf32> -> vector<8x1024xf32>
    %c0_3 = arith.constant 0 : index
    %c0_4 = arith.constant 0 : index
    %3 = vector.load %arg3[%c0_3, %c0_4] : memref<1x1024xf32, #tpu.memory_space<vmem>>, vector<1x1024xf32>
    %4 = vector.broadcast %3 : vector<1x1024xf32> to vector<8x1024xf32>
    %5 = arith.addf %2, %4 : vector<8x1024xf32>
    %cst_5 = arith.constant 0.000000e+00 : f32
    %6 = vector.broadcast %cst_5 : f32 to vector<8x1024xf32>
    %7 = arith.maximumf %5, %6 : vector<8x1024xf32>
    %c0_6 = arith.constant 0 : index
    %c0_7 = arith.constant 0 : index
    %8 = vector.load %arg4[%c0_6, %c0_7] : memref<8x1024xf32, #tpu.memory_space<vmem>>, vector<8x1024xf32>
    tpu.vector_store %arg4[%c0_6, %c0_7], %7 {strides = array<i32>} : memref<8x1024xf32, #tpu.memory_space<vmem>>, vector<8x1024xf32>,
    return
  }
  func.func @transform_0(%arg0: i32) -> (i32, i32) {
    %c0_i32 = arith.constant 0 : i32
    %c0_i32_0 = arith.constant 0 : i32
    return %arg0, %c0_i32 : i32, i32
  }
  func.func @transform_1(%arg0: i32) -> (i32, i32) {
    %c0_i32 = arith.constant 0 : i32
    %c0_i32_0 = arith.constant 0 : i32
    %c0_i32_1 = arith.constant 0 : i32
    return %c0_i32, %c0_i32_0 : i32, i32
  }
  func.func @transform_2(%arg0: i32) -> (i32, i32) {
    %c0_i32 = arith.constant 0 : i32
    %c0_i32_0 = arith.constant 0 : i32
    %c0_i32_1 = arith.constant 0 : i32
    return %c0_i32, %c0_i32_0 : i32, i32
  }
  func.func @transform_3(%arg0: i32) -> (i32, i32) {
    %c0_i32 = arith.constant 0 : i32
    %c0_i32_0 = arith.constant 0 : i32
    return %arg0, %c0_i32 : i32, i32
  }
}

module attributes {stable_mosaic.version = 11 : i64} {
  func.func @_mm_bias_act_kernel(%arg0: i32, %arg1: memref<32x576xf32, #tpu.memory_space<vmem>>, %arg2: memref<576x128xf32, #tpu.memory_space<vmem>>, %arg3: memref<1x128xf32, #tpu.memory_space<vmem>>, %arg4: memref<32x128xf32, #tpu.memory_space<vmem>>) attributes {dimension_semantics = [#tpu.dimension_semantics<parallel>], iteration_bounds = array<i64: 1>, scalar_prefetch = 0 : i64, scratch_operands = 0 : i64, tpu.core_type = #tpu.core_type<tc>, window_params = [{transform_indices = @transform_0, window_bounds = array<i64: 32, 576>}, {pipeline_mode = #tpu.pipeline_mode<synchronous>, transform_indices = @transform_1, window_bounds = array<i64: 576, 128>}, {pipeline_mode = #tpu.pipeline_mode<synchronous>, transform_indices = @transform_2, window_bounds = array<i64: 1, 128>}, {transform_indices = @transform_3, window_bounds = array<i64: 32, 128>}]} {
    %c0 = arith.constant 0 : index
    %c0_0 = arith.constant 0 : index
    %0 = vector.load %arg1[%c0, %c0_0] : memref<32x576xf32, #tpu.memory_space<vmem>>, vector<32x576xf32>
    %c0_1 = arith.constant 0 : index
    %c0_2 = arith.constant 0 : index
    %1 = vector.load %arg2[%c0_1, %c0_2] : memref<576x128xf32, #tpu.memory_space<vmem>>, vector<576x128xf32>
    %cst = arith.constant dense<0.000000e+00> : vector<32x128xf32>
    %2 = tpu.matmul %0, %1, %cst {dimension_numbers = #tpu.dot_dimension_numbers<[1], [0], [0], [1], [0, 0, 1, 1], [], []>} : vector<32x576xf32>, vector<576x128xf32>, vector<32x128xf32> -> vector<32x128xf32>
    %c0_3 = arith.constant 0 : index
    %c0_4 = arith.constant 0 : index
    %3 = vector.load %arg3[%c0_3, %c0_4] : memref<1x128xf32, #tpu.memory_space<vmem>>, vector<1x128xf32>
    %4 = vector.broadcast %3 : vector<1x128xf32> to vector<32x128xf32>
    %5 = arith.addf %2, %4 : vector<32x128xf32>
    %cst_5 = arith.constant 0.000000e+00 : f32
    %6 = vector.broadcast %cst_5 : f32 to vector<32x128xf32>
    %7 = arith.maximumf %5, %6 : vector<32x128xf32>
    %c0_6 = arith.constant 0 : index
    %c0_7 = arith.constant 0 : index
    %8 = vector.load %arg4[%c0_6, %c0_7] : memref<32x128xf32, #tpu.memory_space<vmem>>, vector<32x128xf32>
    tpu.vector_store %arg4[%c0_6, %c0_7], %7 {strides = array<i32>} : memref<32x128xf32, #tpu.memory_space<vmem>>, vector<32x128xf32>,
    return
  }
  func.func @transform_0(%arg0: i32) -> (i32, i32) {
    %c0_i32 = arith.constant 0 : i32
    %c0_i32_0 = arith.constant 0 : i32
    return %arg0, %c0_i32 : i32, i32
  }
  func.func @transform_1(%arg0: i32) -> (i32, i32) {
    %c0_i32 = arith.constant 0 : i32
    %c0_i32_0 = arith.constant 0 : i32
    %c0_i32_1 = arith.constant 0 : i32
    return %c0_i32, %c0_i32_0 : i32, i32
  }
  func.func @transform_2(%arg0: i32) -> (i32, i32) {
    %c0_i32 = arith.constant 0 : i32
    %c0_i32_0 = arith.constant 0 : i32
    %c0_i32_1 = arith.constant 0 : i32
    return %c0_i32, %c0_i32_0 : i32, i32
  }
  func.func @transform_3(%arg0: i32) -> (i32, i32) {
    %c0_i32 = arith.constant 0 : i32
    %c0_i32_0 = arith.constant 0 : i32
    return %arg0, %c0_i32 : i32, i32
  }
}

module attributes {stable_mosaic.version = 11 : i64} {
  func.func @_mm_bias_act_kernel(%arg0: i32, %arg1: memref<128x288xf32, #tpu.memory_space<vmem>>, %arg2: memref<288x64xf32, #tpu.memory_space<vmem>>, %arg3: memref<1x64xf32, #tpu.memory_space<vmem>>, %arg4: memref<128x64xf32, #tpu.memory_space<vmem>>) attributes {dimension_semantics = [#tpu.dimension_semantics<parallel>], iteration_bounds = array<i64: 1>, scalar_prefetch = 0 : i64, scratch_operands = 0 : i64, tpu.core_type = #tpu.core_type<tc>, window_params = [{transform_indices = @transform_0, window_bounds = array<i64: 128, 288>}, {pipeline_mode = #tpu.pipeline_mode<synchronous>, transform_indices = @transform_1, window_bounds = array<i64: 288, 64>}, {pipeline_mode = #tpu.pipeline_mode<synchronous>, transform_indices = @transform_2, window_bounds = array<i64: 1, 64>}, {transform_indices = @transform_3, window_bounds = array<i64: 128, 64>}]} {
    %c0 = arith.constant 0 : index
    %c0_0 = arith.constant 0 : index
    %0 = vector.load %arg1[%c0, %c0_0] : memref<128x288xf32, #tpu.memory_space<vmem>>, vector<128x288xf32>
    %c0_1 = arith.constant 0 : index
    %c0_2 = arith.constant 0 : index
    %1 = vector.load %arg2[%c0_1, %c0_2] : memref<288x64xf32, #tpu.memory_space<vmem>>, vector<288x64xf32>
    %cst = arith.constant dense<0.000000e+00> : vector<128x64xf32>
    %2 = tpu.matmul %0, %1, %cst {dimension_numbers = #tpu.dot_dimension_numbers<[1], [0], [0], [1], [0, 0, 1, 1], [], []>} : vector<128x288xf32>, vector<288x64xf32>, vector<128x64xf32> -> vector<128x64xf32>
    %c0_3 = arith.constant 0 : index
    %c0_4 = arith.constant 0 : index
    %3 = vector.load %arg3[%c0_3, %c0_4] : memref<1x64xf32, #tpu.memory_space<vmem>>, vector<1x64xf32>
    %4 = vector.broadcast %3 : vector<1x64xf32> to vector<128x64xf32>
    %5 = arith.addf %2, %4 : vector<128x64xf32>
    %cst_5 = arith.constant 0.000000e+00 : f32
    %6 = vector.broadcast %cst_5 : f32 to vector<128x64xf32>
    %7 = arith.maximumf %5, %6 : vector<128x64xf32>
    %c0_6 = arith.constant 0 : index
    %c0_7 = arith.constant 0 : index
    %8 = vector.load %arg4[%c0_6, %c0_7] : memref<128x64xf32, #tpu.memory_space<vmem>>, vector<128x64xf32>
    tpu.vector_store %arg4[%c0_6, %c0_7], %7 {strides = array<i32>} : memref<128x64xf32, #tpu.memory_space<vmem>>, vector<128x64xf32>,
    return
  }
  func.func @transform_0(%arg0: i32) -> (i32, i32) {
    %c0_i32 = arith.constant 0 : i32
    %c0_i32_0 = arith.constant 0 : i32
    return %arg0, %c0_i32 : i32, i32
  }
  func.func @transform_1(%arg0: i32) -> (i32, i32) {
    %c0_i32 = arith.constant 0 : i32
    %c0_i32_0 = arith.constant 0 : i32
    %c0_i32_1 = arith.constant 0 : i32
    return %c0_i32, %c0_i32_0 : i32, i32
  }
  func.func @transform_2(%arg0: i32) -> (i32, i32) {
    %c0_i32 = arith.constant 0 : i32
    %c0_i32_0 = arith.constant 0 : i32
    %c0_i32_1 = arith.constant 0 : i32
    return %c0_i32, %c0_i32_0 : i32, i32
  }
  func.func @transform_3(%arg0: i32) -> (i32, i32) {
    %c0_i32 = arith.constant 0 : i32
    %c0_i32_0 = arith.constant 0 : i32
    return %arg0, %c0_i32 : i32, i32
  }
}

module attributes {stable_mosaic.version = 11 : i64} {
  func.func @_mm_bias_act_kernel(%arg0: i32, %arg1: memref<512x144xf32, #tpu.memory_space<vmem>>, %arg2: memref<144x32xf32, #tpu.memory_space<vmem>>, %arg3: memref<1x32xf32, #tpu.memory_space<vmem>>, %arg4: memref<512x32xf32, #tpu.memory_space<vmem>>) attributes {dimension_semantics = [#tpu.dimension_semantics<parallel>], iteration_bounds = array<i64: 1>, scalar_prefetch = 0 : i64, scratch_operands = 0 : i64, tpu.core_type = #tpu.core_type<tc>, window_params = [{transform_indices = @transform_0, window_bounds = array<i64: 512, 144>}, {pipeline_mode = #tpu.pipeline_mode<synchronous>, transform_indices = @transform_1, window_bounds = array<i64: 144, 32>}, {pipeline_mode = #tpu.pipeline_mode<synchronous>, transform_indices = @transform_2, window_bounds = array<i64: 1, 32>}, {transform_indices = @transform_3, window_bounds = array<i64: 512, 32>}]} {
    %c0 = arith.constant 0 : index
    %c0_0 = arith.constant 0 : index
    %0 = vector.load %arg1[%c0, %c0_0] : memref<512x144xf32, #tpu.memory_space<vmem>>, vector<512x144xf32>
    %c0_1 = arith.constant 0 : index
    %c0_2 = arith.constant 0 : index
    %1 = vector.load %arg2[%c0_1, %c0_2] : memref<144x32xf32, #tpu.memory_space<vmem>>, vector<144x32xf32>
    %cst = arith.constant dense<0.000000e+00> : vector<512x32xf32>
    %2 = tpu.matmul %0, %1, %cst {dimension_numbers = #tpu.dot_dimension_numbers<[1], [0], [0], [1], [0, 0, 1, 1], [], []>} : vector<512x144xf32>, vector<144x32xf32>, vector<512x32xf32> -> vector<512x32xf32>
    %c0_3 = arith.constant 0 : index
    %c0_4 = arith.constant 0 : index
    %3 = vector.load %arg3[%c0_3, %c0_4] : memref<1x32xf32, #tpu.memory_space<vmem>>, vector<1x32xf32>
    %4 = vector.broadcast %3 : vector<1x32xf32> to vector<512x32xf32>
    %5 = arith.addf %2, %4 : vector<512x32xf32>
    %cst_5 = arith.constant 0.000000e+00 : f32
    %6 = vector.broadcast %cst_5 : f32 to vector<512x32xf32>
    %7 = arith.maximumf %5, %6 : vector<512x32xf32>
    %c0_6 = arith.constant 0 : index
    %c0_7 = arith.constant 0 : index
    %8 = vector.load %arg4[%c0_6, %c0_7] : memref<512x32xf32, #tpu.memory_space<vmem>>, vector<512x32xf32>
    tpu.vector_store %arg4[%c0_6, %c0_7], %7 {strides = array<i32>} : memref<512x32xf32, #tpu.memory_space<vmem>>, vector<512x32xf32>,
    return
  }
  func.func @transform_0(%arg0: i32) -> (i32, i32) {
    %c0_i32 = arith.constant 0 : i32
    %c0_i32_0 = arith.constant 0 : i32
    return %arg0, %c0_i32 : i32, i32
  }
  func.func @transform_1(%arg0: i32) -> (i32, i32) {
    %c0_i32 = arith.constant 0 : i32
    %c0_i32_0 = arith.constant 0 : i32
    %c0_i32_1 = arith.constant 0 : i32
    return %c0_i32, %c0_i32_0 : i32, i32
  }
  func.func @transform_2(%arg0: i32) -> (i32, i32) {
    %c0_i32 = arith.constant 0 : i32
    %c0_i32_0 = arith.constant 0 : i32
    %c0_i32_1 = arith.constant 0 : i32
    return %c0_i32, %c0_i32_0 : i32, i32
  }
  func.func @transform_3(%arg0: i32) -> (i32, i32) {
    %c0_i32 = arith.constant 0 : i32
    %c0_i32_0 = arith.constant 0 : i32
    return %arg0, %c0_i32 : i32, i32
  }
}

module attributes {stable_mosaic.version = 11 : i64} {
  func.func @_mm_t_bias_act_kernel(%arg0: i32, %arg1: memref<12x72xf32, #tpu.memory_space<vmem>>, %arg2: memref<72x512xf32, #tpu.memory_space<vmem>>, %arg3: memref<12x1xf32, #tpu.memory_space<vmem>>, %arg4: memref<12x512xf32, #tpu.memory_space<vmem>>) attributes {dimension_semantics = [#tpu.dimension_semantics<parallel>], iteration_bounds = array<i64: 4>, scalar_prefetch = 0 : i64, scratch_operands = 0 : i64, tpu.core_type = #tpu.core_type<tc>, window_params = [{pipeline_mode = #tpu.pipeline_mode<synchronous>, transform_indices = @transform_0, window_bounds = array<i64: 12, 72>}, {transform_indices = @transform_1, window_bounds = array<i64: 72, 512>}, {pipeline_mode = #tpu.pipeline_mode<synchronous>, transform_indices = @transform_2, window_bounds = array<i64: 12, 1>}, {transform_indices = @transform_3, window_bounds = array<i64: 12, 512>}]} {
    %c0 = arith.constant 0 : index
    %c0_0 = arith.constant 0 : index
    %0 = vector.load %arg1[%c0, %c0_0] : memref<12x72xf32, #tpu.memory_space<vmem>>, vector<12x72xf32>
    %c0_1 = arith.constant 0 : index
    %c0_2 = arith.constant 0 : index
    %1 = vector.load %arg2[%c0_1, %c0_2] : memref<72x512xf32, #tpu.memory_space<vmem>>, vector<72x512xf32>
    %cst = arith.constant dense<0.000000e+00> : vector<12x512xf32>
    %2 = tpu.matmul %0, %1, %cst {dimension_numbers = #tpu.dot_dimension_numbers<[1], [0], [0], [1], [0, 0, 1, 1], [], []>} : vector<12x72xf32>, vector<72x512xf32>, vector<12x512xf32> -> vector<12x512xf32>
    %c0_3 = arith.constant 0 : index
    %c0_4 = arith.constant 0 : index
    %3 = vector.load %arg3[%c0_3, %c0_4] : memref<12x1xf32, #tpu.memory_space<vmem>>, vector<12x1xf32>
    %4 = vector.broadcast %3 : vector<12x1xf32> to vector<12x512xf32>
    %5 = arith.addf %2, %4 : vector<12x512xf32>
    %6 = math.tanh %5 : vector<12x512xf32>
    %c0_5 = arith.constant 0 : index
    %c0_6 = arith.constant 0 : index
    %7 = vector.load %arg4[%c0_5, %c0_6] : memref<12x512xf32, #tpu.memory_space<vmem>>, vector<12x512xf32>
    tpu.vector_store %arg4[%c0_5, %c0_6], %6 {strides = array<i32>} : memref<12x512xf32, #tpu.memory_space<vmem>>, vector<12x512xf32>,
    return
  }
  func.func @transform_0(%arg0: i32) -> (i32, i32) {
    %c0_i32 = arith.constant 0 : i32
    %c0_i32_0 = arith.constant 0 : i32
    %c0_i32_1 = arith.constant 0 : i32
    return %c0_i32, %c0_i32_0 : i32, i32
  }
  func.func @transform_1(%arg0: i32) -> (i32, i32) {
    %c0_i32 = arith.constant 0 : i32
    %c0_i32_0 = arith.constant 0 : i32
    return %c0_i32, %arg0 : i32, i32
  }
  func.func @transform_2(%arg0: i32) -> (i32, i32) {
    %c0_i32 = arith.constant 0 : i32
    %c0_i32_0 = arith.constant 0 : i32
    %c0_i32_1 = arith.constant 0 : i32
    return %c0_i32, %c0_i32_0 : i32, i32
  }
  func.func @transform_3(%arg0: i32) -> (i32, i32) {
    %c0_i32 = arith.constant 0 : i32
    %c0_i32_0 = arith.constant 0 : i32
    return %c0_i32, %arg0 : i32, i32
  }
}

</mosaic_0001>

<llo_original>
// kernel: tile.34
$region0: #{tile.34}
  %s0 = inlined_call_operand.vmem [shape: f32[4,32], index: 0, kind: input, shape index: {}]
  %s1 = inlined_call_operand.vmem [shape: f32[1,128], index: 1, kind: output, shape index: {}]
  $region1: #{tile.34} parent=0
    #allocation0 [shape = 'u8[4096]{0}', space=vmem, size = 0x1000, scoped, tag = 'scoped mem for output reshape']
    #allocation1 [shape = 'u8[4096]{0}', space=vmem, size = 0x1000, scoped, tag = 'scoped mem for input reshape']
    %s3 = ssub.s32 16, 1
    %v4 = vld [vmem:[%s0] sm:%s3]
    %5 = vst [vmem:[#allocation1] sm:%s3] %v4
    %v6 = vld [vmem:[#allocation1] sm:$0x1]
    %vm7 = vcmask 261120
    %8 = vst.msk [vmem:[#allocation0] sm:$0x1] %vm7, %v6
    %s9 = scalar_lea.vmem [#allocation1], 3
    %v10 = vld [vmem:[%s9] sm:$0x1]
    %11 = vrot.lane.b32.xlu0 %v10, 96
    %v12 = vpop.permute.xlu0 %11
    %vm13 = vcmask 1048320
    %14 = vst.msk [vmem:[#allocation0] sm:$0x1] %vm13, %v12
    %s15 = scalar_lea.vmem [#allocation1], 2
    %v16 = vld [vmem:[%s15] sm:$0x1]
    %17 = vrot.lane.b32.xlu0 %v16, 64
    %v18 = vpop.permute.xlu0 %17
    %vm19 = vcmask 785920
    %20 = vst.msk [vmem:[#allocation0] sm:$0x1] %vm19, %v18
    %s21 = scalar_lea.vmem [#allocation1], 1
    %v22 = vld [vmem:[%s21] sm:$0x1]
    %23 = vrot.lane.b32.xlu0 %v22, 32
    %v24 = vpop.permute.xlu0 %23
    %vm25 = vcmask 523520
    %26 = vst.msk [vmem:[#allocation0] sm:$0x1] %vm25, %v24
    %s28 = ssub.s32 2, 1
    %v29 = vld [vmem:[#allocation0] sm:%s28]
    %s31 = ssub.s32 2, 1
    %32 = vst [vmem:[%s1] sm:%s31] %v29

// kernel: tile.39
$region0: #{tile.39}
  %s0 = inlined_call_operand.vmem [shape: f32[4,16], index: 0, kind: input, shape index: {}]
  %s1 = inlined_call_operand.vmem [shape: f32[1,64], index: 1, kind: output, shape index: {}]
  $region1: #{tile.39} parent=0
    #allocation0 [shape = 'u8[4096]{0}', space=vmem, size = 0x1000, scoped, tag = 'scoped mem for output reshape']
    #allocation1 [shape = 'u8[4096]{0}', space=vmem, size = 0x1000, scoped, tag = 'scoped mem for input reshape']
    %s3 = ssub.s32 16, 1
    %v4 = vld [vmem:[%s0] sm:%s3]
    %5 = vst [vmem:[#allocation1] sm:%s3] %v4
    %v6 = vld [vmem:[#allocation1] sm:$0x1]
    %vm7 = vcmask 130048
    %8 = vst.msk [vmem:[#allocation0] sm:$0x1] %vm7, %v6
    %s9 = scalar_lea.vmem [#allocation1], 3
    %v10 = vld [vmem:[%s9] sm:$0x1]
    %11 = vrot.lane.b32.xlu0 %v10, 48
    %v12 = vpop.permute.xlu0 %11
    %vm13 = vcmask 523648
    %14 = vst.msk [vmem:[#allocation0] sm:$0x1] %vm13, %v12
    %s15 = scalar_lea.vmem [#allocation1], 2
    %v16 = vld [vmem:[%s15] sm:$0x1]
    %17 = vrot.lane.b32.xlu0 %v16, 32
    %v18 = vpop.permute.xlu0 %17
    %vm19 = vcmask 392448
    %20 = vst.msk [vmem:[#allocation0] sm:$0x1] %vm19, %v18
    %s21 = scalar_lea.vmem [#allocation1], 1
    %v22 = vld [vmem:[%s21] sm:$0x1]
    %23 = vrot.lane.b32.xlu0 %v22, 16
    %v24 = vpop.permute.xlu0 %23
    %vm25 = vcmask 261248
    %26 = vst.msk [vmem:[#allocation0] sm:$0x1] %vm25, %v24
    %s28 = ssub.s32 2, 1
    %v29 = vld [vmem:[#allocation0] sm:%s28]
    %s31 = ssub.s32 2, 1
    %32 = vst [vmem:[%s1] sm:%s31] %v29

// kernel: tile.38
$region0: #{tile.38}
  #allocation2 [shape = 's32[1]{0}', space=sflag, size = 0x4, scoped, tag = 'scoped memory for tile.38']
  %s0 = inlined_call_operand.hbm [shape: f32[16], index: 0, kind: input, shape index: {}]
  %s1 = inlined_call_operand.vmem [shape: f32[4,16], index: 1, kind: output, shape index: {}]
  $region1: #{tile.38} parent=0
    #allocation0 [shape = 'u8[512]{0}', space=vmem, size = 0x400, scoped, tag = 'operand span for operand 0']
    #allocation1 [shape = 's32[1]{0}', space=sflag, size = 0x4, scoped, tag = 'scoped memory for tile.38']
    %2 = vsyncpa [#allocation1], 0
    // Predicated region
    $region2: #{tile.38} parent=1 // pred_check
      _
    $region3: #{tile.38} parent=1 // pred_check_branch
      %4 = sbr.rel (0) target = $region5
    $region4: #{tile.38} parent=1 // pred_region
      %6 = vsyncadd [#allocation1], 0
      %s8 = sshll.u32 %s0, 4
      %s9 = int_to_ptr.hbm [resolvable:$true] %s8
      %s10 = sshll.u32 [#allocation0], 4
      %s11 = int_to_ptr.vmem [resolvable:$true] %s10
      %13 = dma.hbm_to_vmem [thread:$0]  %s9, 16, %s11, [#allocation1]
    $region5: #{tile.38} parent=1 // pred_fallthru
      _
    // Predicated region
    $region6: #{tile.38} parent=1 // pred_check
      _
    $region7: #{tile.38} parent=1 // pred_check_branch
      %15 = sbr.rel (0) target = $region9
    $region8: #{tile.38} parent=1 // pred_region
      %17 = dma.done [#allocation1], 16
    $region9: #{tile.38} parent=1 // pred_fallthru
      _
    %v18 = vld [vmem:[#allocation0] ss:$0 sm:$0xff]
    %19 = vst [vmem:[%s1] sm:$0xf] %v18
    %20 = vsyncpa [#allocation1], 1

// kernel: tile.33
$region0: #{tile.33}
  #allocation2 [shape = 's32[1]{0}', space=sflag, size = 0x4, scoped, tag = 'scoped memory for tile.33']
  %s0 = inlined_call_operand.hbm [shape: f32[32], index: 0, kind: input, shape index: {}]
  %s1 = inlined_call_operand.vmem [shape: f32[4,32], index: 1, kind: output, shape index: {}]
  $region1: #{tile.33} parent=0
    #allocation0 [shape = 'u8[512]{0}', space=vmem, size = 0x400, scoped, tag = 'operand span for operand 0']
    #allocation1 [shape = 's32[1]{0}', space=sflag, size = 0x4, scoped, tag = 'scoped memory for tile.33']
    %2 = vsyncpa [#allocation1], 0
    // Predicated region
    $region2: #{tile.33} parent=1 // pred_check
      _
    $region3: #{tile.33} parent=1 // pred_check_branch
      %4 = sbr.rel (0) target = $region5
    $region4: #{tile.33} parent=1 // pred_region
      %6 = vsyncadd [#allocation1], 0
      %s8 = sshll.u32 %s0, 4
      %s9 = int_to_ptr.hbm [resolvable:$true] %s8
      %s10 = sshll.u32 [#allocation0], 4
      %s11 = int_to_ptr.vmem [resolvable:$true] %s10
      %13 = dma.hbm_to_vmem [thread:$0]  %s9, 16, %s11, [#allocation1]
    $region5: #{tile.33} parent=1 // pred_fallthru
      _
    // Predicated region
    $region6: #{tile.33} parent=1 // pred_check
      _
    $region7: #{tile.33} parent=1 // pred_check_branch
      %15 = sbr.rel (0) target = $region9
    $region8: #{tile.33} parent=1 // pred_region
      %17 = dma.done [#allocation1], 16
    $region9: #{tile.33} parent=1 // pred_fallthru
      _
    %v18 = vld [vmem:[#allocation0] ss:$0 sm:$0xff]
    %19 = vst [vmem:[%s1] sm:$0xf] %v18
    %20 = vsyncpa [#allocation1], 1

// kernel: tile.43
$region0: #{tile.43}
  #allocation2 [shape = 's32[1]{0}', space=sflag, size = 0x4, scoped, tag = 'scoped memory for tile.43']
  %s0 = inlined_call_operand.hbm [shape: f32[8], index: 0, kind: input, shape index: {}]
  %s1 = inlined_call_operand.vmem [shape: f32[4,8], index: 1, kind: output, shape index: {}]
  $region1: #{tile.43} parent=0
    #allocation0 [shape = 'u8[512]{0}', space=vmem, size = 0x400, scoped, tag = 'operand span for operand 0']
    #allocation1 [shape = 's32[1]{0}', space=sflag, size = 0x4, scoped, tag = 'scoped memory for tile.43']
    %2 = vsyncpa [#allocation1], 0
    // Predicated region
    $region2: #{tile.43} parent=1 // pred_check
      _
    $region3: #{tile.43} parent=1 // pred_check_branch
      %4 = sbr.rel (0) target = $region5
    $region4: #{tile.43} parent=1 // pred_region
      %6 = vsyncadd [#allocation1], 0
      %s8 = sshll.u32 %s0, 4
      %s9 = int_to_ptr.hbm [resolvable:$true] %s8
      %s10 = sshll.u32 [#allocation0], 4
      %s11 = int_to_ptr.vmem [resolvable:$true] %s10
      %13 = dma.hbm_to_vmem [thread:$0]  %s9, 16, %s11, [#allocation1]
    $region5: #{tile.43} parent=1 // pred_fallthru
      _
    // Predicated region
    $region6: #{tile.43} parent=1 // pred_check
      _
    $region7: #{tile.43} parent=1 // pred_check_branch
      %15 = sbr.rel (0) target = $region9
    $region8: #{tile.43} parent=1 // pred_region
      %17 = dma.done [#allocation1], 16
    $region9: #{tile.43} parent=1 // pred_fallthru
      _
    %v18 = vld [vmem:[#allocation0] ss:$0 sm:$0xff]
    %19 = vst [vmem:[%s1] sm:$0xf] %v18
    %20 = vsyncpa [#allocation1], 1

// kernel: tile.44
$region0: #{tile.44}
  %s0 = inlined_call_operand.vmem [shape: f32[4,8], index: 0, kind: input, shape index: {}]
  %s1 = inlined_call_operand.vmem [shape: f32[1,32], index: 1, kind: output, shape index: {}]
  $region1: #{tile.44} parent=0
    #allocation0 [shape = 'u8[4096]{0}', space=vmem, size = 0x1000, scoped, tag = 'scoped mem for output reshape']
    #allocation1 [shape = 'u8[4096]{0}', space=vmem, size = 0x1000, scoped, tag = 'scoped mem for input reshape']
    %s3 = ssub.s32 16, 1
    %v4 = vld [vmem:[%s0] sm:%s3]
    %5 = vst [vmem:[#allocation1] sm:%s3] %v4
    %v6 = vld [vmem:[#allocation1] sm:$0x1]
    %vm7 = vcmask 64512
    %8 = vst.msk [vmem:[#allocation0] sm:$0x1] %vm7, %v6
    %s9 = scalar_lea.vmem [#allocation1], 3
    %v10 = vld [vmem:[%s9] sm:$0x1]
    %11 = vrot.lane.b32.xlu0 %v10, 24
    %v12 = vpop.permute.xlu0 %11
    %vm13 = vcmask 261312
    %14 = vst.msk [vmem:[#allocation0] sm:$0x1] %vm13, %v12
    %s15 = scalar_lea.vmem [#allocation1], 2
    %v16 = vld [vmem:[%s15] sm:$0x1]
    %17 = vrot.lane.b32.xlu0 %v16, 16
    %v18 = vpop.permute.xlu0 %17
    %vm19 = vcmask 195712
    %20 = vst.msk [vmem:[#allocation0] sm:$0x1] %vm19, %v18
    %s21 = scalar_lea.vmem [#allocation1], 1
    %v22 = vld [vmem:[%s21] sm:$0x1]
    %23 = vrot.lane.b32.xlu0 %v22, 8
    %v24 = vpop.permute.xlu0 %23
    %vm25 = vcmask 130112
    %26 = vst.msk [vmem:[#allocation0] sm:$0x1] %vm25, %v24
    %s28 = ssub.s32 2, 1
    %v29 = vld [vmem:[#allocation0] sm:%s28]
    %s31 = ssub.s32 2, 1
    %32 = vst [vmem:[%s1] sm:%s31] %v29

// kernel: tile.48
$region0: #{tile.48}
  #allocation2 [shape = 's32[1]{0}', space=sflag, size = 0x4, scoped, tag = 'scoped memory for tile.48']
  %s0 = inlined_call_operand.hbm [shape: f32[3], index: 0, kind: input, shape index: {}]
  %s1 = inlined_call_operand.vmem [shape: f32[4,3], index: 1, kind: output, shape index: {}]
  $region1: #{tile.48} parent=0
    #allocation0 [shape = 'u8[512]{0}', space=vmem, size = 0x400, scoped, tag = 'operand span for operand 0']
    #allocation1 [shape = 's32[1]{0}', space=sflag, size = 0x4, scoped, tag = 'scoped memory for tile.48']
    %2 = vsyncpa [#allocation1], 0
    // Predicated region
    $region2: #{tile.48} parent=1 // pred_check
      _
    $region3: #{tile.48} parent=1 // pred_check_branch
      %4 = sbr.rel (0) target = $region5
    $region4: #{tile.48} parent=1 // pred_region
      %6 = vsyncadd [#allocation1], 0
      %s8 = sshll.u32 %s0, 4
      %s9 = int_to_ptr.hbm [resolvable:$true] %s8
      %s10 = sshll.u32 [#allocation0], 4
      %s11 = int_to_ptr.vmem [resolvable:$true] %s10
      %13 = dma.hbm_to_vmem [thread:$0]  %s9, 16, %s11, [#allocation1]
    $region5: #{tile.48} parent=1 // pred_fallthru
      _
    // Predicated region
    $region6: #{tile.48} parent=1 // pred_check
      _
    $region7: #{tile.48} parent=1 // pred_check_branch
      %15 = sbr.rel (0) target = $region9
    $region8: #{tile.48} parent=1 // pred_region
      %17 = dma.done [#allocation1], 16
    $region9: #{tile.48} parent=1 // pred_fallthru
      _
    %v18 = vld [vmem:[#allocation0] ss:$0 sm:$0xff]
    %19 = vst [vmem:[%s1] sm:$0xf] %v18
    %20 = vsyncpa [#allocation1], 1

// kernel: tile.0
$region0: #{tile.0}
  %s0 = inlined_call_operand.vmem [shape: f32[4,3], index: 0, kind: input, shape index: {}]
  %s1 = inlined_call_operand.vmem [shape: f32[12,1], index: 1, kind: output, shape index: {}]
  $region1: #{tile.0} parent=0
    #allocation0 [shape = 'u8[4096]{0}', space=vmem, size = 0x1000, scoped, tag = 'scoped mem for input reshape']
    %s3 = ssub.s32 16, 1
    %v4 = vld [vmem:[%s0] sm:%s3]
    %5 = vst [vmem:[#allocation0] sm:%s3] %v4
    %v6 = vld [vmem:[#allocation0] sm:$0xf]
    %vm7 = vcmask 7168
    %8 = vst.msk [vmem:[%s1] ss:$3 sm:$0xf] %vm7, %v6
    %v9 = vld [vmem:[#allocation0] sm:$0xf]
    %10 = vrot.lane.b32.xlu0 %v9, 127
    %v11 = vpop.permute.xlu0 %10
    %vm12 = vcmask 7168
    %s13 = scalar_lea.vmem %s1, 1
    %14 = vst.msk [vmem:[%s13] ss:$3 sm:$0xf] %vm12, %v11
    %v15 = vld [vmem:[#allocation0] sm:$0xf]
    %16 = vrot.lane.b32.xlu0 %v15, 126
    %v17 = vpop.permute.xlu0 %16
    %vm18 = vcmask 7168
    %s19 = scalar_lea.vmem %s1, 2
    %20 = vst.msk [vmem:[%s19] ss:$3 sm:$0xf] %vm18, %v17

// kernel: tile.28
$region0: #{tile.28}
  #allocation2 [shape = 's32[1]{0}', space=sflag, size = 0x4, scoped, tag = 'scoped memory for tile.28']
  %s0 = inlined_call_operand.hbm [shape: f32[64], index: 0, kind: input, shape index: {}]
  %s1 = inlined_call_operand.vmem [shape: f32[16,64], index: 1, kind: output, shape index: {}]
  $region1: #{tile.28} parent=0
    #allocation0 [shape = 'u8[512]{0}', space=vmem, size = 0x400, scoped, tag = 'operand span for operand 0']
    #allocation1 [shape = 's32[1]{0}', space=sflag, size = 0x4, scoped, tag = 'scoped memory for tile.28']
    %2 = vsyncpa [#allocation1], 0
    // Predicated region
    $region2: #{tile.28} parent=1 // pred_check
      _
    $region3: #{tile.28} parent=1 // pred_check_branch
      %4 = sbr.rel (0) target = $region5
    $region4: #{tile.28} parent=1 // pred_region
      %6 = vsyncadd [#allocation1], 0
      %s8 = sshll.u32 %s0, 4
      %s9 = int_to_ptr.hbm [resolvable:$true] %s8
      %s10 = sshll.u32 [#allocation0], 4
      %s11 = int_to_ptr.vmem [resolvable:$true] %s10
      %13 = dma.hbm_to_vmem [thread:$0]  %s9, 16, %s11, [#allocation1]
    $region5: #{tile.28} parent=1 // pred_fallthru
      _
    // Predicated region
    $region6: #{tile.28} parent=1 // pred_check
      _
    $region7: #{tile.28} parent=1 // pred_check_branch
      %15 = sbr.rel (0) target = $region9
    $region8: #{tile.28} parent=1 // pred_region
      %17 = dma.done [#allocation1], 16
    $region9: #{tile.28} parent=1 // pred_fallthru
      _
    %v18 = vld [vmem:[#allocation0] ss:$0 sm:$0xff]
    %19 = vst [vmem:[%s1] sm:$0xff] %v18
    %s20 = scalar_lea.vmem %s1, 8
    %21 = vst [vmem:[%s20] sm:$0xff] %v18
    %22 = vsyncpa [#allocation1], 1

// kernel: tile.29
$region0: #{tile.29}
  %s0 = inlined_call_operand.vmem [shape: f32[16,64], index: 0, kind: input, shape index: {}]
  %s1 = inlined_call_operand.vmem [shape: f32[1,1024], index: 1, kind: output, shape index: {}]
  $region1: #{tile.29} parent=0
    #allocation0 [shape = 'u8[32768]{0}', space=vmem, size = 0x8000, scoped, tag = 'scoped mem for output reshape']
    %v2 = vld [vmem:[%s0] ss:$2 sm:$0xff]
    %vm3 = vcmask 523264
    %4 = vst.msk [vmem:[#allocation0] ss:$8 sm:$0xf] %vm3, %v2
    %5 = vst.msk [vmem:[#allocation0] ss:$8 sm:$0xf0] %vm3, %v2
    %s6 = scalar_lea.vmem %s0, 1
    %v7 = vld [vmem:[%s6] ss:$2 sm:$0xff]
    %8 = vrot.lane.b32.xlu0 %v7, 64
    %v9 = vpop.permute.xlu0 %8
    %vm10 = vcmask 1048064
    %11 = vst.msk [vmem:[#allocation0] ss:$8 sm:$0xf] %vm10, %v9
    %12 = vst.msk [vmem:[#allocation0] ss:$8 sm:$0xf0] %vm10, %v9
    %s14 = ssub.s32 2, 1
    %v15 = vld [vmem:[#allocation0] sm:%s14]
    %s17 = ssub.s32 2, 1
    %18 = vst [vmem:[%s1] sm:%s17] %v15
    %s19 = scalar_lea.vmem [#allocation0], 8
    %v20 = vld [vmem:[%s19] sm:%s14]
    %s22 = ssub.s32 2, 1
    %s23 = scalar_lea.vmem %s1, 1
    %24 = vst [vmem:[%s23] sm:%s22] %v20
    %s25 = scalar_lea.vmem [#allocation0], 16
    %v26 = vld [vmem:[%s25] sm:%s14]
    %s28 = ssub.s32 2, 1
    %s29 = scalar_lea.vmem %s1, 2
    %30 = vst [vmem:[%s29] sm:%s28] %v26
    %s31 = scalar_lea.vmem [#allocation0], 24
    %v32 = vld [vmem:[%s31] sm:%s14]
    %s34 = ssub.s32 2, 1
    %s35 = scalar_lea.vmem %s1, 3
    %36 = vst [vmem:[%s35] sm:%s34] %v32
    %s37 = scalar_lea.vmem [#allocation0], 32
    %v38 = vld [vmem:[%s37] sm:%s14]
    %s40 = ssub.s32 2, 1
    %s41 = scalar_lea.vmem %s1, 4
    %42 = vst [vmem:[%s41] sm:%s40] %v38
    %s43 = scalar_lea.vmem [#allocation0], 40
    %v44 = vld [vmem:[%s43] sm:%s14]
    %s46 = ssub.s32 2, 1
    %s47 = scalar_lea.vmem %s1, 5
    %48 = vst [vmem:[%s47] sm:%s46] %v44
    %s49 = scalar_lea.vmem [#allocation0], 48
    %v50 = vld [vmem:[%s49] sm:%s14]
    %s52 = ssub.s32 2, 1
    %s53 = scalar_lea.vmem %s1, 6
    %54 = vst [vmem:[%s53] sm:%s52] %v50
    %s55 = scalar_lea.vmem [#allocation0], 56
    %v56 = vld [vmem:[%s55] sm:%s14]
    %s58 = ssub.s32 2, 1
    %s59 = scalar_lea.vmem %s1, 7
    %60 = vst [vmem:[%s59] sm:%s58] %v56

// kernel: generator_forward.5
$region0: #{generator_forward.5}
  #allocation0 [shape = 'u32[]', space=smem, size = 0x4, offset = 0x4, fixed_abs, tag = 'smem constant byte address 0x4 - core index']
  #allocation1 [shape = 'u32[72,128]{1,0:T(1,128)}', space=vmem, size = 0x9000, scoped, tag = 'internal scratch']
  %s0 = inlined_call_operand.vmem [shape: f32[8,16], index: 0, kind: input, shape index: {}]
  %s1 = inlined_call_operand.vmem [shape: f32[16,1024], index: 1, kind: input, shape index: {}]
  %s2 = inlined_call_operand.vmem [shape: f32[1,1024], index: 2, kind: input, shape index: {}]
  %s3 = inlined_call_operand.vmem [shape: f32[8,1024], index: 3, kind: output, shape index: {}]
  %s4 = sld [smem:[#allocation0]]
  $region22: #{generator_forward.5} parent=0
    _
  %s6 = ssub.s32 1, %s4
  %s7 = scalar_select 0, %s6, %s4
  // Predicated region
  $region2: #{generator_forward.5} parent=0 // pred_check
    _
  $region3: #{generator_forward.5} parent=0 // pred_check_branch
    %9 = sbr.rel (0) target = $region5
  $region4: #{generator_forward.5} parent=0 // pred_region
    _
  $region5: #{generator_forward.5} parent=0 // pred_fallthru
    _
  // Predicated region
  $region6: #{generator_forward.5} parent=0 // pred_check
    _
  $region7: #{generator_forward.5} parent=0 // pred_check_branch
    %11 = sbr.rel (0) target = $region9
  $region8: #{generator_forward.5} parent=0 // pred_region
    _
  $region9: #{generator_forward.5} parent=0 // pred_fallthru
    _
  // Predicated region
  $region10: #{generator_forward.5} parent=0 // pred_check
    _
  $region11: #{generator_forward.5} parent=0 // pred_check_branch
    %13 = sbr.rel (0) target = $region13
  $region12: #{generator_forward.5} parent=0 // pred_region
    _
  $region13: #{generator_forward.5} parent=0 // pred_fallthru
    _
  %v14 = vld [vmem:[%s0] sm:$0xff]
  %v15 = vld [vmem:[%s1] sm:$0xff]
  %v16 = vld [vmem:[%s1 + $0x8] sm:$0xff]
  %v17 = vld [vmem:[%s1 + $0x10] sm:$0xff]
  %v18 = vld [vmem:[%s1 + $0x18] sm:$0xff]
  %v19 = vld [vmem:[%s1 + $0x20] sm:$0xff]
  %v20 = vld [vmem:[%s1 + $0x28] sm:$0xff]
  %v21 = vld [vmem:[%s1 + $0x30] sm:$0xff]
  %v22 = vld [vmem:[%s1 + $0x38] sm:$0xff]
  %v23 = vld [vmem:[%s1 + $0x40] sm:$0xff]
  %v24 = vld [vmem:[%s1 + $0x48] sm:$0xff]
  %v25 = vld [vmem:[%s1 + $0x50] sm:$0xff]
  %v26 = vld [vmem:[%s1 + $0x58] sm:$0xff]
  %v27 = vld [vmem:[%s1 + $0x60] sm:$0xff]
  %v28 = vld [vmem:[%s1 + $0x68] sm:$0xff]
  %v29 = vld [vmem:[%s1 + $0x70] sm:$0xff]
  %v30 = vld [vmem:[%s1 + $0x78] sm:$0xff]
  %v31 = vld [vmem:[%s2] sm:$0xff]
  %v33 = vperm.slane %v31, 0
  %v34 = vperm.slane %v31, 1
  %v35 = vperm.slane %v31, 2
  %v36 = vperm.slane %v31, 3
  %v37 = vperm.slane %v31, 4
  %v38 = vperm.slane %v31, 5
  %v39 = vperm.slane %v31, 6
  %v40 = vperm.slane %v31, 7
  %vm49 = vcmask 130048
  %v51 = vsel %vm49, %v14, 0
  %53 = vmatpush.msra.mxu0 0.0
  %54 = vmatpush.msra.mxu0 0.0
  %55 = vmatpush.msra.mxu0 0.0
  %56 = vmatpush.msra.mxu0 0.0
  %57 = vmatpush.msra.mxu0 0.0
  %58 = vmatpush.msra.mxu0 0.0
  %59 = vmatpush.msra.mxu0 0.0
  %60 = vmatpush.msra.mxu0 0.0
  %61 = vmatpush.msra.mxu0 0.0
  %62 = vmatpush.msra.mxu0 0.0
  %63 = vmatpush.msra.mxu0 0.0
  %64 = vmatpush.msra.mxu0 0.0
  %65 = vmatpush.msra.mxu0 0.0
  %66 = vmatpush.msra.mxu0 0.0
  %67 = vmatpush.msra.mxu0 %v23
  %68 = vmatpush.msra.mxu0 %v15
  %69 = vmatmul.f32.gmra.mxu0 %v51
  %v70 = vpop.f32.mrf.mxu0
  %v71 = vadd.f32 %v33, %v70
  %72 = vdwg.mxu0
  %73 = vmatpush.msra.mxu0 0.0
  %74 = vmatpush.msra.mxu0 0.0
  %75 = vmatpush.msra.mxu0 0.0
  %76 = vmatpush.msra.mxu0 0.0
  %77 = vmatpush.msra.mxu0 0.0
  %78 = vmatpush.msra.mxu0 0.0
  %79 = vmatpush.msra.mxu0 0.0
  %80 = vmatpush.msra.mxu0 0.0
  %81 = vmatpush.msra.mxu0 0.0
  %82 = vmatpush.msra.mxu0 0.0
  %83 = vmatpush.msra.mxu0 0.0
  %84 = vmatpush.msra.mxu0 0.0
  %85 = vmatpush.msra.mxu0 0.0
  %86 = vmatpush.msra.mxu0 0.0
  %87 = vmatpush.msra.mxu0 %v24
  %88 = vmatpush.msra.mxu0 %v16
  %89 = vmatmul.f32.gmra.mxu0 %v51
  %v90 = vpop.f32.mrf.mxu0
  %v91 = vadd.f32 %v34, %v90
  %92 = vdwg.mxu0
  %93 = vmatpush.msra.mxu0 0.0
  %94 = vmatpush.msra.mxu0 0.0
  %95 = vmatpush.msra.mxu0 0.0
  %96 = vmatpush.msra.mxu0 0.0
  %97 = vmatpush.msra.mxu0 0.0
  %98 = vmatpush.msra.mxu0 0.0
  %99 = vmatpush.msra.mxu0 0.0
  %100 = vmatpush.msra.mxu0 0.0
  %101 = vmatpush.msra.mxu0 0.0
  %102 = vmatpush.msra.mxu0 0.0
  %103 = vmatpush.msra.mxu0 0.0
  %104 = vmatpush.msra.mxu0 0.0
  %105 = vmatpush.msra.mxu0 0.0
  %106 = vmatpush.msra.mxu0 0.0
  %107 = vmatpush.msra.mxu0 %v25
  %108 = vmatpush.msra.mxu0 %v17
  %109 = vmatmul.f32.gmra.mxu0 %v51
  %v110 = vpop.f32.mrf.mxu0
  %v111 = vadd.f32 %v35, %v110
  %112 = vdwg.mxu0
  %113 = vmatpush.msra.mxu0 0.0
  %114 = vmatpush.msra.mxu0 0.0
  %115 = vmatpush.msra.mxu0 0.0
  %116 = vmatpush.msra.mxu0 0.0
  %117 = vmatpush.msra.mxu0 0.0
  %118 = vmatpush.msra.mxu0 0.0
  %119 = vmatpush.msra.mxu0 0.0
  %120 = vmatpush.msra.mxu0 0.0
  %121 = vmatpush.msra.mxu0 0.0
  %122 = vmatpush.msra.mxu0 0.0
  %123 = vmatpush.msra.mxu0 0.0
  %124 = vmatpush.msra.mxu0 0.0
  %125 = vmatpush.msra.mxu0 0.0
  %126 = vmatpush.msra.mxu0 0.0
  %127 = vmatpush.msra.mxu0 %v26
  %128 = vmatpush.msra.mxu0 %v18
  %129 = vmatmul.f32.gmra.mxu0 %v51
  %v130 = vpop.f32.mrf.mxu0
  %v131 = vadd.f32 %v36, %v130
  %132 = vdwg.mxu0
  %133 = vmatpush.msra.mxu0 0.0
  %134 = vmatpush.msra.mxu0 0.0
  %135 = vmatpush.msra.mxu0 0.0
  %136 = vmatpush.msra.mxu0 0.0
  %137 = vmatpush.msra.mxu0 0.0
  %138 = vmatpush.msra.mxu0 0.0
  %139 = vmatpush.msra.mxu0 0.0
  %140 = vmatpush.msra.mxu0 0.0
  %141 = vmatpush.msra.mxu0 0.0
  %142 = vmatpush.msra.mxu0 0.0
  %143 = vmatpush.msra.mxu0 0.0
  %144 = vmatpush.msra.mxu0 0.0
  %145 = vmatpush.msra.mxu0 0.0
  %146 = vmatpush.msra.mxu0 0.0
  %147 = vmatpush.msra.mxu0 %v27
  %148 = vmatpush.msra.mxu0 %v19
  %149 = vmatmul.f32.gmra.mxu0 %v51
  %v150 = vpop.f32.mrf.mxu0
  %v151 = vadd.f32 %v37, %v150
  %152 = vdwg.mxu0
  %153 = vmatpush.msra.mxu0 0.0
  %154 = vmatpush.msra.mxu0 0.0
  %155 = vmatpush.msra.mxu0 0.0
  %156 = vmatpush.msra.mxu0 0.0
  %157 = vmatpush.msra.mxu0 0.0
  %158 = vmatpush.msra.mxu0 0.0
  %159 = vmatpush.msra.mxu0 0.0
  %160 = vmatpush.msra.mxu0 0.0
  %161 = vmatpush.msra.mxu0 0.0
  %162 = vmatpush.msra.mxu0 0.0
  %163 = vmatpush.msra.mxu0 0.0
  %164 = vmatpush.msra.mxu0 0.0
  %165 = vmatpush.msra.mxu0 0.0
  %166 = vmatpush.msra.mxu0 0.0
  %167 = vmatpush.msra.mxu0 %v28
  %168 = vmatpush.msra.mxu0 %v20
  %169 = vmatmul.f32.gmra.mxu0 %v51
  %v170 = vpop.f32.mrf.mxu0
  %v171 = vadd.f32 %v38, %v170
  %172 = vdwg.mxu0
  %173 = vmatpush.msra.mxu0 0.0
  %174 = vmatpush.msra.mxu0 0.0
  %175 = vmatpush.msra.mxu0 0.0
  %176 = vmatpush.msra.mxu0 0.0
  %177 = vmatpush.msra.mxu0 0.0
  %178 = vmatpush.msra.mxu0 0.0
  %179 = vmatpush.msra.mxu0 0.0
  %180 = vmatpush.msra.mxu0 0.0
  %181 = vmatpush.msra.mxu0 0.0
  %182 = vmatpush.msra.mxu0 0.0
  %183 = vmatpush.msra.mxu0 0.0
  %184 = vmatpush.msra.mxu0 0.0
  %185 = vmatpush.msra.mxu0 0.0
  %186 = vmatpush.msra.mxu0 0.0
  %187 = vmatpush.msra.mxu0 %v29
  %188 = vmatpush.msra.mxu0 %v21
  %189 = vmatmul.f32.gmra.mxu0 %v51
  %v190 = vpop.f32.mrf.mxu0
  %v191 = vadd.f32 %v39, %v190
  %192 = vdwg.mxu0
  %193 = vmatpush.msra.mxu0 0.0
  %194 = vmatpush.msra.mxu0 0.0
  %195 = vmatpush.msra.mxu0 0.0
  %196 = vmatpush.msra.mxu0 0.0
  %197 = vmatpush.msra.mxu0 0.0
  %198 = vmatpush.msra.mxu0 0.0
  %199 = vmatpush.msra.mxu0 0.0
  %200 = vmatpush.msra.mxu0 0.0
  %201 = vmatpush.msra.mxu0 0.0
  %202 = vmatpush.msra.mxu0 0.0
  %203 = vmatpush.msra.mxu0 0.0
  %204 = vmatpush.msra.mxu0 0.0
  %205 = vmatpush.msra.mxu0 0.0
  %206 = vmatpush.msra.mxu0 0.0
  %207 = vmatpush.msra.mxu0 %v30
  %208 = vmatpush.msra.mxu0 %v22
  %209 = vmatmul.f32.gmra.mxu0 %v51
  %v210 = vpop.f32.mrf.mxu0
  %v211 = vadd.f32 %v40, %v210
  %212 = vdwg.mxu0
  %v213 = vmax.f32 %v71, 0.0
  %v214 = vmax.f32 %v91, 0.0
  %v215 = vmax.f32 %v111, 0.0
  %v216 = vmax.f32 %v131, 0.0
  %v217 = vmax.f32 %v151, 0.0
  %v218 = vmax.f32 %v171, 0.0
  %v219 = vmax.f32 %v191, 0.0
  %v220 = vmax.f32 %v211, 0.0
  %221 = vst [vmem:[%s3] sm:$0xff] %v213
  %222 = vst [vmem:[%s3 + $0x8] sm:$0xff] %v214
  %223 = vst [vmem:[%s3 + $0x10] sm:$0xff] %v215
  %224 = vst [vmem:[%s3 + $0x18] sm:$0xff] %v216
  %225 = vst [vmem:[%s3 + $0x20] sm:$0xff] %v217
  %226 = vst [vmem:[%s3 + $0x28] sm:$0xff] %v218
  %227 = vst [vmem:[%s3 + $0x30] sm:$0xff] %v219
  %228 = vst [vmem:[%s3 + $0x38] sm:$0xff] %v220
  // Predicated region
  $region14: #{generator_forward.5} parent=0 // pred_check
    _
  $region15: #{generator_forward.5} parent=0 // pred_check_branch
    %230 = sbr.rel (0) target = $region17
  $region16: #{generator_forward.5} parent=0 // pred_region
    _
  $region17: #{generator_forward.5} parent=0 // pred_fallthru
    _
  // Predicated region
  $region18: #{generator_forward.5} parent=0 // pred_check
    _
  $region19: #{generator_forward.5} parent=0 // pred_check_branch
    %232 = sbr.rel (0) target = $region21
  $region20: #{generator_forward.5} parent=0 // pred_region
    _
  $region21: #{generator_forward.5} parent=0 // pred_fallthru
    _

// kernel: generator_forward.6
$region0: #{generator_forward.6}
  #allocation0 [shape = 'u32[]', space=smem, size = 0x4, offset = 0x4, fixed_abs, tag = 'smem constant byte address 0x4 - core index']
  #allocation1 [shape = 'u32[72,128]{1,0:T(1,128)}', space=vmem, size = 0x9000, scoped, tag = 'internal scratch']
  %s0 = inlined_call_operand.vmem [shape: f32[32,576], index: 0, kind: input, shape index: {}]
  %s1 = inlined_call_operand.vmem [shape: f32[576,128], index: 1, kind: input, shape index: {}]
  %s2 = inlined_call_operand.vmem [shape: f32[1,128], index: 2, kind: input, shape index: {}]
  %s3 = inlined_call_operand.vmem [shape: f32[32,128], index: 3, kind: output, shape index: {}]
  %s4 = sld [smem:[#allocation0]]
  $region22: #{generator_forward.6} parent=0
    _
  %s6 = ssub.s32 1, %s4
  %s7 = scalar_select 0, %s6, %s4
  // Predicated region
  $region2: #{generator_forward.6} parent=0 // pred_check
    _
  $region3: #{generator_forward.6} parent=0 // pred_check_branch
    %9 = sbr.rel (0) target = $region5
  $region4: #{generator_forward.6} parent=0 // pred_region
    _
  $region5: #{generator_forward.6} parent=0 // pred_fallthru
    _
  // Predicated region
  $region6: #{generator_forward.6} parent=0 // pred_check
    _
  $region7: #{generator_forward.6} parent=0 // pred_check_branch
    %11 = sbr.rel (0) target = $region9
  $region8: #{generator_forward.6} parent=0 // pred_region
    _
  $region9: #{generator_forward.6} parent=0 // pred_fallthru
    _
  // Predicated region
  $region10: #{generator_forward.6} parent=0 // pred_check
    _
  $region11: #{generator_forward.6} parent=0 // pred_check_branch
    %13 = sbr.rel (0) target = $region13
  $region12: #{generator_forward.6} parent=0 // pred_region
    _
  $region13: #{generator_forward.6} parent=0 // pred_fallthru
    _
  %v14 = vld [vmem:[%s0] sm:$0xff]
  %v15 = vld [vmem:[%s0 + $0x8] sm:$0xff]
  %v16 = vld [vmem:[%s0 + $0x10] sm:$0xff]
  %v17 = vld [vmem:[%s0 + $0x18] sm:$0xff]
  %v18 = vld [vmem:[%s0 + $0x20] sm:$0xff]
  %v19 = vld [vmem:[%s0 + $0x28] sm:$0xff]
  %v20 = vld [vmem:[%s0 + $0x30] sm:$0xff]
  %v21 = vld [vmem:[%s0 + $0x38] sm:$0xff]
  %v22 = vld [vmem:[%s0 + $0x40] sm:$0xff]
  %v23 = vld [vmem:[%s0 + $0x48] sm:$0xff]
  %v24 = vld [vmem:[%s0 + $0x50] sm:$0xff]
  %v25 = vld [vmem:[%s0 + $0x58] sm:$0xff]
  %v26 = vld [vmem:[%s0 + $0x60] sm:$0xff]
  %v27 = vld [vmem:[%s0 + $0x68] sm:$0xff]
  %v28 = vld [vmem:[%s0 + $0x70] sm:$0xff]
  %v29 = vld [vmem:[%s0 + $0x78] sm:$0xff]
  %v30 = vld [vmem:[%s0 + $0x80] sm:$0xff]
  %v31 = vld [vmem:[%s0 + $0x88] sm:$0xff]
  %v32 = vld [vmem:[%s0 + $0x90] sm:$0xff]
  %v33 = vld [vmem:[%s0 + $0x98] sm:$0xff]
  %v34 = vld [vmem:[%s1] sm:$0xff]
  %v35 = vld [vmem:[%s1 + $0x8] sm:$0xff]
  %v36 = vld [vmem:[%s1 + $0x10] sm:$0xff]
  %v37 = vld [vmem:[%s1 + $0x18] sm:$0xff]
  %v38 = vld [vmem:[%s1 + $0x20] sm:$0xff]
  %v39 = vld [vmem:[%s1 + $0x28] sm:$0xff]
  %v40 = vld [vmem:[%s1 + $0x30] sm:$0xff]
  %v41 = vld [vmem:[%s1 + $0x38] sm:$0xff]
  %v42 = vld [vmem:[%s1 + $0x40] sm:$0xff]
  %v43 = vld [vmem:[%s1 + $0x48] sm:$0xff]
  %v44 = vld [vmem:[%s1 + $0x50] sm:$0xff]
  %v45 = vld [vmem:[%s1 + $0x58] sm:$0xff]
  %v46 = vld [vmem:[%s1 + $0x60] sm:$0xff]
  %v47 = vld [vmem:[%s1 + $0x68] sm:$0xff]
  %v48 = vld [vmem:[%s1 + $0x70] sm:$0xff]
  %v49 = vld [vmem:[%s1 + $0x78] sm:$0xff]
  %v50 = vld [vmem:[%s1 + $0x80] sm:$0xff]
  %v51 = vld [vmem:[%s1 + $0x88] sm:$0xff]
  %v52 = vld [vmem:[%s1 + $0x90] sm:$0xff]
  %v53 = vld [vmem:[%s1 + $0x98] sm:$0xff]
  %v54 = vld [vmem:[%s1 + $0xa0] sm:$0xff]
  %v55 = vld [vmem:[%s1 + $0xa8] sm:$0xff]
  %v56 = vld [vmem:[%s1 + $0xb0] sm:$0xff]
  %v57 = vld [vmem:[%s1 + $0xb8] sm:$0xff]
  %v58 = vld [vmem:[%s1 + $0xc0] sm:$0xff]
  %v59 = vld [vmem:[%s1 + $0xc8] sm:$0xff]
  %v60 = vld [vmem:[%s1 + $0xd0] sm:$0xff]
  %v61 = vld [vmem:[%s1 + $0xd8] sm:$0xff]
  %v62 = vld [vmem:[%s1 + $0xe0] sm:$0xff]
  %v63 = vld [vmem:[%s1 + $0xe8] sm:$0xff]
  %v64 = vld [vmem:[%s1 + $0xf0] sm:$0xff]
  %v65 = vld [vmem:[%s1 + $0xf8] sm:$0xff]
  %v66 = vld [vmem:[%s1 + $0x100] sm:$0xff]
  %v67 = vld [vmem:[%s1 + $0x108] sm:$0xff]
  %v68 = vld [vmem:[%s1 + $0x110] sm:$0xff]
  %v69 = vld [vmem:[%s1 + $0x118] sm:$0xff]
  %v70 = vld [vmem:[%s1 + $0x120] sm:$0xff]
  %v71 = vld [vmem:[%s1 + $0x128] sm:$0xff]
  %v72 = vld [vmem:[%s1 + $0x130] sm:$0xff]
  %v73 = vld [vmem:[%s1 + $0x138] sm:$0xff]
  %v74 = vld [vmem:[%s1 + $0x140] sm:$0xff]
  %v75 = vld [vmem:[%s1 + $0x148] sm:$0xff]
  %v76 = vld [vmem:[%s1 + $0x150] sm:$0xff]
  %v77 = vld [vmem:[%s1 + $0x158] sm:$0xff]
  %v78 = vld [vmem:[%s1 + $0x160] sm:$0xff]
  %v79 = vld [vmem:[%s1 + $0x168] sm:$0xff]
  %v80 = vld [vmem:[%s1 + $0x170] sm:$0xff]
  %v81 = vld [vmem:[%s1 + $0x178] sm:$0xff]
  %v82 = vld [vmem:[%s1 + $0x180] sm:$0xff]
  %v83 = vld [vmem:[%s1 + $0x188] sm:$0xff]
  %v84 = vld [vmem:[%s1 + $0x190] sm:$0xff]
  %v85 = vld [vmem:[%s1 + $0x198] sm:$0xff]
  %v86 = vld [vmem:[%s1 + $0x1a0] sm:$0xff]
  %v87 = vld [vmem:[%s1 + $0x1a8] sm:$0xff]
  %v88 = vld [vmem:[%s1 + $0x1b0] sm:$0xff]
  %v89 = vld [vmem:[%s1 + $0x1b8] sm:$0xff]
  %v90 = vld [vmem:[%s1 + $0x1c0] sm:$0xff]
  %v91 = vld [vmem:[%s1 + $0x1c8] sm:$0xff]
  %v92 = vld [vmem:[%s1 + $0x1d0] sm:$0xff]
  %v93 = vld [vmem:[%s1 + $0x1d8] sm:$0xff]
  %v94 = vld [vmem:[%s1 + $0x1e0] sm:$0xff]
  %v95 = vld [vmem:[%s1 + $0x1e8] sm:$0xff]
  %v96 = vld [vmem:[%s1 + $0x1f0] sm:$0xff]
  %v97 = vld [vmem:[%s1 + $0x1f8] sm:$0xff]
  %v98 = vld [vmem:[%s1 + $0x200] sm:$0xff]
  %v99 = vld [vmem:[%s1 + $0x208] sm:$0xff]
  %v100 = vld [vmem:[%s1 + $0x210] sm:$0xff]
  %v101 = vld [vmem:[%s1 + $0x218] sm:$0xff]
  %v102 = vld [vmem:[%s1 + $0x220] sm:$0xff]
  %v103 = vld [vmem:[%s1 + $0x228] sm:$0xff]
  %v104 = vld [vmem:[%s1 + $0x230] sm:$0xff]
  %v105 = vld [vmem:[%s1 + $0x238] sm:$0xff]
  %v106 = vld [vmem:[%s2] sm:$0x1]
  %v108 = vperm.slane %v106, 0
  %vm110 = vcmask 523264
  %v112 = vsel %vm110, %v18, 0
  %v115 = vsel %vm110, %v23, 0
  %v118 = vsel %vm110, %v28, 0
  %v121 = vsel %vm110, %v33, 0
  %123 = vmatpush.msra.mxu0 %v49
  %124 = vmatpush.msra.mxu0 %v48
  %125 = vmatpush.msra.mxu0 %v47
  %126 = vmatpush.msra.mxu0 %v46
  %127 = vmatpush.msra.mxu0 %v45
  %128 = vmatpush.msra.mxu0 %v44
  %129 = vmatpush.msra.mxu0 %v43
  %130 = vmatpush.msra.mxu0 %v42
  %131 = vmatpush.msra.mxu0 %v41
  %132 = vmatpush.msra.mxu0 %v40
  %133 = vmatpush.msra.mxu0 %v39
  %134 = vmatpush.msra.mxu0 %v38
  %135 = vmatpush.msra.mxu0 %v37
  %136 = vmatpush.msra.mxu0 %v36
  %137 = vmatpush.msra.mxu0 %v35
  %138 = vmatpush.msra.mxu0 %v34
  %139 = vmatmul.f32.gmra.mxu0 %v14
  %v140 = vpop.f32.mrf.mxu0
  %v141 = vadd.f32 %v108, %v140
  %142 = vmatmul.f32.gmra.mxu0 %v19
  %v143 = vpop.f32.mrf.mxu0
  %v144 = vadd.f32 %v108, %v143
  %145 = vmatmul.f32.gmra.mxu0 %v24
  %v146 = vpop.f32.mrf.mxu0
  %v147 = vadd.f32 %v108, %v146
  %148 = vmatmul.f32.gmra.mxu0 %v29
  %v149 = vpop.f32.mrf.mxu0
  %v150 = vadd.f32 %v108, %v149
  %151 = vdwg.mxu0
  %152 = vmatpush.msra.mxu0 %v65
  %153 = vmatpush.msra.mxu0 %v64
  %154 = vmatpush.msra.mxu0 %v63
  %155 = vmatpush.msra.mxu0 %v62
  %156 = vmatpush.msra.mxu0 %v61
  %157 = vmatpush.msra.mxu0 %v60
  %158 = vmatpush.msra.mxu0 %v59
  %159 = vmatpush.msra.mxu0 %v58
  %160 = vmatpush.msra.mxu0 %v57
  %161 = vmatpush.msra.mxu0 %v56
  %162 = vmatpush.msra.mxu0 %v55
  %163 = vmatpush.msra.mxu0 %v54
  %164 = vmatpush.msra.mxu0 %v53
  %165 = vmatpush.msra.mxu0 %v52
  %166 = vmatpush.msra.mxu0 %v51
  %167 = vmatpush.msra.mxu0 %v50
  %168 = vmatmul.f32.gmra.mxu0 %v15
  %v169 = vpop.f32.mrf.mxu0
  %v170 = vadd.f32 %v141, %v169
  %171 = vmatmul.f32.gmra.mxu0 %v20
  %v172 = vpop.f32.mrf.mxu0
  %v173 = vadd.f32 %v144, %v172
  %174 = vmatmul.f32.gmra.mxu0 %v25
  %v175 = vpop.f32.mrf.mxu0
  %v176 = vadd.f32 %v147, %v175
  %177 = vmatmul.f32.gmra.mxu0 %v30
  %v178 = vpop.f32.mrf.mxu0
  %v179 = vadd.f32 %v150, %v178
  %180 = vdwg.mxu0
  %181 = vmatpush.msra.mxu0 %v81
  %182 = vmatpush.msra.mxu0 %v80
  %183 = vmatpush.msra.mxu0 %v79
  %184 = vmatpush.msra.mxu0 %v78
  %185 = vmatpush.msra.mxu0 %v77
  %186 = vmatpush.msra.mxu0 %v76
  %187 = vmatpush.msra.mxu0 %v75
  %188 = vmatpush.msra.mxu0 %v74
  %189 = vmatpush.msra.mxu0 %v73
  %190 = vmatpush.msra.mxu0 %v72
  %191 = vmatpush.msra.mxu0 %v71
  %192 = vmatpush.msra.mxu0 %v70
  %193 = vmatpush.msra.mxu0 %v69
  %194 = vmatpush.msra.mxu0 %v68
  %195 = vmatpush.msra.mxu0 %v67
  %196 = vmatpush.msra.mxu0 %v66
  %197 = vmatmul.f32.gmra.mxu0 %v16
  %v198 = vpop.f32.mrf.mxu0
  %v199 = vadd.f32 %v170, %v198
  %200 = vmatmul.f32.gmra.mxu0 %v21
  %v201 = vpop.f32.mrf.mxu0
  %v202 = vadd.f32 %v173, %v201
  %203 = vmatmul.f32.gmra.mxu0 %v26
  %v204 = vpop.f32.mrf.mxu0
  %v205 = vadd.f32 %v176, %v204
  %206 = vmatmul.f32.gmra.mxu0 %v31
  %v207 = vpop.f32.mrf.mxu0
  %v208 = vadd.f32 %v179, %v207
  %209 = vdwg.mxu0
  %210 = vmatpush.msra.mxu0 %v97
  %211 = vmatpush.msra.mxu0 %v96
  %212 = vmatpush.msra.mxu0 %v95
  %213 = vmatpush.msra.mxu0 %v94
  %214 = vmatpush.msra.mxu0 %v93
  %215 = vmatpush.msra.mxu0 %v92
  %216 = vmatpush.msra.mxu0 %v91
  %217 = vmatpush.msra.mxu0 %v90
  %218 = vmatpush.msra.mxu0 %v89
  %219 = vmatpush.msra.mxu0 %v88
  %220 = vmatpush.msra.mxu0 %v87
  %221 = vmatpush.msra.mxu0 %v86
  %222 = vmatpush.msra.mxu0 %v85
  %223 = vmatpush.msra.mxu0 %v84
  %224 = vmatpush.msra.mxu0 %v83
  %225 = vmatpush.msra.mxu0 %v82
  %226 = vmatmul.f32.gmra.mxu0 %v17
  %v227 = vpop.f32.mrf.mxu0
  %v228 = vadd.f32 %v199, %v227
  %229 = vmatmul.f32.gmra.mxu0 %v22
  %v230 = vpop.f32.mrf.mxu0
  %v231 = vadd.f32 %v202, %v230
  %232 = vmatmul.f32.gmra.mxu0 %v27
  %v233 = vpop.f32.mrf.mxu0
  %v234 = vadd.f32 %v205, %v233
  %235 = vmatmul.f32.gmra.mxu0 %v32
  %v236 = vpop.f32.mrf.mxu0
  %v237 = vadd.f32 %v208, %v236
  %238 = vdwg.mxu0
  %239 = vmatpush.msra.mxu0 0.0
  %240 = vmatpush.msra.mxu0 0.0
  %241 = vmatpush.msra.mxu0 0.0
  %242 = vmatpush.msra.mxu0 0.0
  %243 = vmatpush.msra.mxu0 0.0
  %244 = vmatpush.msra.mxu0 0.0
  %245 = vmatpush.msra.mxu0 0.0
  %246 = vmatpush.msra.mxu0 0.0
  %247 = vmatpush.msra.mxu0 %v105
  %248 = vmatpush.msra.mxu0 %v104
  %249 = vmatpush.msra.mxu0 %v103
  %250 = vmatpush.msra.mxu0 %v102
  %251 = vmatpush.msra.mxu0 %v101
  %252 = vmatpush.msra.mxu0 %v100
  %253 = vmatpush.msra.mxu0 %v99
  %254 = vmatpush.msra.mxu0 %v98
  %255 = vmatmul.f32.gmra.mxu0 %v112
  %v256 = vpop.f32.mrf.mxu0
  %v257 = vadd.f32 %v228, %v256
  %258 = vmatmul.f32.gmra.mxu0 %v115
  %v259 = vpop.f32.mrf.mxu0
  %v260 = vadd.f32 %v231, %v259
  %261 = vmatmul.f32.gmra.mxu0 %v118
  %v262 = vpop.f32.mrf.mxu0
  %v263 = vadd.f32 %v234, %v262
  %264 = vmatmul.f32.gmra.mxu0 %v121
  %v265 = vpop.f32.mrf.mxu0
  %v266 = vadd.f32 %v237, %v265
  %267 = vdwg.mxu0
  %v268 = vmax.f32 %v257, 0.0
  %v269 = vmax.f32 %v260, 0.0
  %v270 = vmax.f32 %v263, 0.0
  %v271 = vmax.f32 %v266, 0.0
  %272 = vst [vmem:[%s3] sm:$0xff] %v268
  %273 = vst [vmem:[%s3 + $0x8] sm:$0xff] %v269
  %274 = vst [vmem:[%s3 + $0x10] sm:$0xff] %v270
  %275 = vst [vmem:[%s3 + $0x18] sm:$0xff] %v271
  // Predicated region
  $region14: #{generator_forward.6} parent=0 // pred_check
    _
  $region15: #{generator_forward.6} parent=0 // pred_check_branch
    %277 = sbr.rel (0) target = $region17
  $region16: #{generator_forward.6} parent=0 // pred_region
    _
  $region17: #{generator_forward.6} parent=0 // pred_fallthru
    _
  // Predicated region
  $region18: #{generator_forward.6} parent=0 // pred_check
    _
  $region19: #{generator_forward.6} parent=0 // pred_check_branch
    %279 = sbr.rel (0) target = $region21
  $region20: #{generator_forward.6} parent=0 // pred_region
    _
  $region21: #{generator_forward.6} parent=0 // pred_fallthru
    _

// kernel: generator_forward.7
$region0: #{generator_forward.7}
  #allocation0 [shape = 'u32[]', space=smem, size = 0x4, offset = 0x4, fixed_abs, tag = 'smem constant byte address 0x4 - core index']
  #allocation1 [shape = 'u32[72,128]{1,0:T(1,128)}', space=vmem, size = 0x9000, scoped, tag = 'internal scratch']
  %s0 = inlined_call_operand.vmem [shape: f32[128,288], index: 0, kind: input, shape index: {}]
  %s1 = inlined_call_operand.vmem [shape: f32[288,64], index: 1, kind: input, shape index: {}]
  %s2 = inlined_call_operand.vmem [shape: f32[1,64], index: 2, kind: input, shape index: {}]
  %s3 = inlined_call_operand.vmem [shape: f32[128,64], index: 3, kind: output, shape index: {}]
  %s4 = sld [smem:[#allocation0]]
  $region22: #{generator_forward.7} parent=0
    _
  %s6 = ssub.s32 1, %s4
  %s7 = scalar_select 0, %s6, %s4
  // Predicated region
  $region2: #{generator_forward.7} parent=0 // pred_check
    _
  $region3: #{generator_forward.7} parent=0 // pred_check_branch
    %9 = sbr.rel (0) target = $region5
  $region4: #{generator_forward.7} parent=0 // pred_region
    _
  $region5: #{generator_forward.7} parent=0 // pred_fallthru
    _
  // Predicated region
  $region6: #{generator_forward.7} parent=0 // pred_check
    _
  $region7: #{generator_forward.7} parent=0 // pred_check_branch
    %11 = sbr.rel (0) target = $region9
  $region8: #{generator_forward.7} parent=0 // pred_region
    _
  $region9: #{generator_forward.7} parent=0 // pred_fallthru
    _
  // Predicated region
  $region10: #{generator_forward.7} parent=0 // pred_check
    _
  $region11: #{generator_forward.7} parent=0 // pred_check_branch
    %13 = sbr.rel (0) target = $region13
  $region12: #{generator_forward.7} parent=0 // pred_region
    _
  $region13: #{generator_forward.7} parent=0 // pred_fallthru
    _
  %v14 = vld [vmem:[%s0] sm:$0xff]
  %v15 = vld [vmem:[%s0 + $0x8] sm:$0xff]
  %v16 = vld [vmem:[%s0 + $0x10] sm:$0xff]
  %v17 = vld [vmem:[%s0 + $0x18] sm:$0xff]
  %v18 = vld [vmem:[%s0 + $0x20] sm:$0xff]
  %v19 = vld [vmem:[%s0 + $0x28] sm:$0xff]
  %v20 = vld [vmem:[%s0 + $0x30] sm:$0xff]
  %v21 = vld [vmem:[%s0 + $0x38] sm:$0xff]
  %v22 = vld [vmem:[%s0 + $0x40] sm:$0xff]
  %v23 = vld [vmem:[%s0 + $0x48] sm:$0xff]
  %v24 = vld [vmem:[%s0 + $0x50] sm:$0xff]
  %v25 = vld [vmem:[%s0 + $0x58] sm:$0xff]
  %v26 = vld [vmem:[%s0 + $0x60] sm:$0xff]
  %v27 = vld [vmem:[%s0 + $0x68] sm:$0xff]
  %v28 = vld [vmem:[%s0 + $0x70] sm:$0xff]
  %v29 = vld [vmem:[%s0 + $0x78] sm:$0xff]
  %v30 = vld [vmem:[%s0 + $0x80] sm:$0xff]
  %v31 = vld [vmem:[%s0 + $0x88] sm:$0xff]
  %v32 = vld [vmem:[%s0 + $0x90] sm:$0xff]
  %v33 = vld [vmem:[%s0 + $0x98] sm:$0xff]
  %v34 = vld [vmem:[%s0 + $0xa0] sm:$0xff]
  %v35 = vld [vmem:[%s0 + $0xa8] sm:$0xff]
  %v36 = vld [vmem:[%s0 + $0xb0] sm:$0xff]
  %v37 = vld [vmem:[%s0 + $0xb8] sm:$0xff]
  %v38 = vld [vmem:[%s0 + $0xc0] sm:$0xff]
  %v39 = vld [vmem:[%s0 + $0xc8] sm:$0xff]
  %v40 = vld [vmem:[%s0 + $0xd0] sm:$0xff]
  %v41 = vld [vmem:[%s0 + $0xd8] sm:$0xff]
  %v42 = vld [vmem:[%s0 + $0xe0] sm:$0xff]
  %v43 = vld [vmem:[%s0 + $0xe8] sm:$0xff]
  %v44 = vld [vmem:[%s0 + $0xf0] sm:$0xff]
  %v45 = vld [vmem:[%s0 + $0xf8] sm:$0xff]
  %v46 = vld [vmem:[%s0 + $0x100] sm:$0xff]
  %v47 = vld [vmem:[%s0 + $0x108] sm:$0xff]
  %v48 = vld [vmem:[%s0 + $0x110] sm:$0xff]
  %v49 = vld [vmem:[%s0 + $0x118] sm:$0xff]
  %v50 = vld [vmem:[%s0 + $0x120] sm:$0xff]
  %v51 = vld [vmem:[%s0 + $0x128] sm:$0xff]
  %v52 = vld [vmem:[%s0 + $0x130] sm:$0xff]
  %v53 = vld [vmem:[%s0 + $0x138] sm:$0xff]
  %v54 = vld [vmem:[%s0 + $0x140] sm:$0xff]
  %v55 = vld [vmem:[%s0 + $0x148] sm:$0xff]
  %v56 = vld [vmem:[%s0 + $0x150] sm:$0xff]
  %v57 = vld [vmem:[%s0 + $0x158] sm:$0xff]
  %v58 = vld [vmem:[%s0 + $0x160] sm:$0xff]
  %v59 = vld [vmem:[%s0 + $0x168] sm:$0xff]
  %v60 = vld [vmem:[%s0 + $0x170] sm:$0xff]
  %v61 = vld [vmem:[%s0 + $0x178] sm:$0xff]
  %v62 = vld [vmem:[%s1] sm:$0xff]
  %v63 = vld [vmem:[%s1 + $0x8] sm:$0xff]
  %v64 = vld [vmem:[%s1 + $0x10] sm:$0xff]
  %v65 = vld [vmem:[%s1 + $0x18] sm:$0xff]
  %v66 = vld [vmem:[%s1 + $0x20] sm:$0xff]
  %v67 = vld [vmem:[%s1 + $0x28] sm:$0xff]
  %v68 = vld [vmem:[%s1 + $0x30] sm:$0xff]
  %v69 = vld [vmem:[%s1 + $0x38] sm:$0xff]
  %v70 = vld [vmem:[%s1 + $0x40] sm:$0xff]
  %v71 = vld [vmem:[%s1 + $0x48] sm:$0xff]
  %v72 = vld [vmem:[%s1 + $0x50] sm:$0xff]
  %v73 = vld [vmem:[%s1 + $0x58] sm:$0xff]
  %v74 = vld [vmem:[%s1 + $0x60] sm:$0xff]
  %v75 = vld [vmem:[%s1 + $0x68] sm:$0xff]
  %v76 = vld [vmem:[%s1 + $0x70] sm:$0xff]
  %v77 = vld [vmem:[%s1 + $0x78] sm:$0xff]
  %v78 = vld [vmem:[%s1 + $0x80] sm:$0xff]
  %v79 = vld [vmem:[%s1 + $0x88] sm:$0xff]
  %v80 = vld [vmem:[%s1 + $0x90] sm:$0xff]
  %v81 = vld [vmem:[%s1 + $0x98] sm:$0xff]
  %v82 = vld [vmem:[%s1 + $0xa0] sm:$0xff]
  %v83 = vld [vmem:[%s1 + $0xa8] sm:$0xff]
  %v84 = vld [vmem:[%s1 + $0xb0] sm:$0xff]
  %v85 = vld [vmem:[%s1 + $0xb8] sm:$0xff]
  %v86 = vld [vmem:[%s1 + $0xc0] sm:$0xff]
  %v87 = vld [vmem:[%s1 + $0xc8] sm:$0xff]
  %v88 = vld [vmem:[%s1 + $0xd0] sm:$0xff]
  %v89 = vld [vmem:[%s1 + $0xd8] sm:$0xff]
  %v90 = vld [vmem:[%s1 + $0xe0] sm:$0xff]
  %v91 = vld [vmem:[%s1 + $0xe8] sm:$0xff]
  %v92 = vld [vmem:[%s1 + $0xf0] sm:$0xff]
  %v93 = vld [vmem:[%s1 + $0xf8] sm:$0xff]
  %v94 = vld [vmem:[%s1 + $0x100] sm:$0xff]
  %v95 = vld [vmem:[%s1 + $0x108] sm:$0xff]
  %v96 = vld [vmem:[%s1 + $0x110] sm:$0xff]
  %v97 = vld [vmem:[%s1 + $0x118] sm:$0xff]
  %v98 = vld [vmem:[%s2] sm:$0x1]
  %v100 = vperm.slane %v98, 0
  %vm102 = vcmask 261120
  %v104 = vsel %vm102, %v16, 0
  %v107 = vsel %vm102, %v19, 0
  %v110 = vsel %vm102, %v22, 0
  %v113 = vsel %vm102, %v25, 0
  %v116 = vsel %vm102, %v28, 0
  %v119 = vsel %vm102, %v31, 0
  %v122 = vsel %vm102, %v34, 0
  %v125 = vsel %vm102, %v37, 0
  %v128 = vsel %vm102, %v40, 0
  %v131 = vsel %vm102, %v43, 0
  %v134 = vsel %vm102, %v46, 0
  %v137 = vsel %vm102, %v49, 0
  %v140 = vsel %vm102, %v52, 0
  %v143 = vsel %vm102, %v55, 0
  %v146 = vsel %vm102, %v58, 0
  %v149 = vsel %vm102, %v61, 0
  %151 = vmatpush.msra.mxu0 %v77
  %152 = vmatpush.msra.mxu0 %v76
  %153 = vmatpush.msra.mxu0 %v75
  %154 = vmatpush.msra.mxu0 %v74
  %155 = vmatpush.msra.mxu0 %v73
  %156 = vmatpush.msra.mxu0 %v72
  %157 = vmatpush.msra.mxu0 %v71
  %158 = vmatpush.msra.mxu0 %v70
  %159 = vmatpush.msra.mxu0 %v69
  %160 = vmatpush.msra.mxu0 %v68
  %161 = vmatpush.msra.mxu0 %v67
  %162 = vmatpush.msra.mxu0 %v66
  %163 = vmatpush.msra.mxu0 %v65
  %164 = vmatpush.msra.mxu0 %v64
  %165 = vmatpush.msra.mxu0 %v63
  %166 = vmatpush.msra.mxu0 %v62
  %167 = vmatmul.f32.gmra.mxu0 %v14
  %v168 = vpop.f32.mrf.mxu0
  %v169 = vadd.f32 %v100, %v168
  %170 = vmatmul.f32.gmra.mxu0 %v17
  %v171 = vpop.f32.mrf.mxu0
  %v172 = vadd.f32 %v100, %v171
  %173 = vmatmul.f32.gmra.mxu0 %v20
  %v174 = vpop.f32.mrf.mxu0
  %v175 = vadd.f32 %v100, %v174
  %176 = vmatmul.f32.gmra.mxu0 %v23
  %v177 = vpop.f32.mrf.mxu0
  %v178 = vadd.f32 %v100, %v177
  %179 = vmatmul.f32.gmra.mxu0 %v26
  %v180 = vpop.f32.mrf.mxu0
  %v181 = vadd.f32 %v100, %v180
  %182 = vmatmul.f32.gmra.mxu0 %v29
  %v183 = vpop.f32.mrf.mxu0
  %v184 = vadd.f32 %v100, %v183
  %185 = vmatmul.f32.gmra.mxu0 %v32
  %v186 = vpop.f32.mrf.mxu0
  %v187 = vadd.f32 %v100, %v186
  %188 = vmatmul.f32.gmra.mxu0 %v35
  %v189 = vpop.f32.mrf.mxu0
  %v190 = vadd.f32 %v100, %v189
  %191 = vmatmul.f32.gmra.mxu0 %v38
  %v192 = vpop.f32.mrf.mxu0
  %v193 = vadd.f32 %v100, %v192
  %194 = vmatmul.f32.gmra.mxu0 %v41
  %v195 = vpop.f32.mrf.mxu0
  %v196 = vadd.f32 %v100, %v195
  %197 = vmatmul.f32.gmra.mxu0 %v44
  %v198 = vpop.f32.mrf.mxu0
  %v199 = vadd.f32 %v100, %v198
  %200 = vmatmul.f32.gmra.mxu0 %v47
  %v201 = vpop.f32.mrf.mxu0
  %v202 = vadd.f32 %v100, %v201
  %203 = vmatmul.f32.gmra.mxu0 %v50
  %v204 = vpop.f32.mrf.mxu0
  %v205 = vadd.f32 %v100, %v204
  %206 = vmatmul.f32.gmra.mxu0 %v53
  %v207 = vpop.f32.mrf.mxu0
  %v208 = vadd.f32 %v100, %v207
  %209 = vmatmul.f32.gmra.mxu0 %v56
  %v210 = vpop.f32.mrf.mxu0
  %v211 = vadd.f32 %v100, %v210
  %212 = vmatmul.f32.gmra.mxu0 %v59
  %v213 = vpop.f32.mrf.mxu0
  %v214 = vadd.f32 %v100, %v213
  %215 = vdwg.mxu0
  %216 = vmatpush.msra.mxu0 %v93
  %217 = vmatpush.msra.mxu0 %v92
  %218 = vmatpush.msra.mxu0 %v91
  %219 = vmatpush.msra.mxu0 %v90
  %220 = vmatpush.msra.mxu0 %v89
  %221 = vmatpush.msra.mxu0 %v88
  %222 = vmatpush.msra.mxu0 %v87
  %223 = vmatpush.msra.mxu0 %v86
  %224 = vmatpush.msra.mxu0 %v85
  %225 = vmatpush.msra.mxu0 %v84
  %226 = vmatpush.msra.mxu0 %v83
  %227 = vmatpush.msra.mxu0 %v82
  %228 = vmatpush.msra.mxu0 %v81
  %229 = vmatpush.msra.mxu0 %v80
  %230 = vmatpush.msra.mxu0 %v79
  %231 = vmatpush.msra.mxu0 %v78
  %232 = vmatmul.f32.gmra.mxu0 %v15
  %v233 = vpop.f32.mrf.mxu0
  %v234 = vadd.f32 %v169, %v233
  %235 = vmatmul.f32.gmra.mxu0 %v18
  %v236 = vpop.f32.mrf.mxu0
  %v237 = vadd.f32 %v172, %v236
  %238 = vmatmul.f32.gmra.mxu0 %v21
  %v239 = vpop.f32.mrf.mxu0
  %v240 = vadd.f32 %v175, %v239
  %241 = vmatmul.f32.gmra.mxu0 %v24
  %v242 = vpop.f32.mrf.mxu0
  %v243 = vadd.f32 %v178, %v242
  %244 = vmatmul.f32.gmra.mxu0 %v27
  %v245 = vpop.f32.mrf.mxu0
  %v246 = vadd.f32 %v181, %v245
  %247 = vmatmul.f32.gmra.mxu0 %v30
  %v248 = vpop.f32.mrf.mxu0
  %v249 = vadd.f32 %v184, %v248
  %250 = vmatmul.f32.gmra.mxu0 %v33
  %v251 = vpop.f32.mrf.mxu0
  %v252 = vadd.f32 %v187, %v251
  %253 = vmatmul.f32.gmra.mxu0 %v36
  %v254 = vpop.f32.mrf.mxu0
  %v255 = vadd.f32 %v190, %v254
  %256 = vmatmul.f32.gmra.mxu0 %v39
  %v257 = vpop.f32.mrf.mxu0
  %v258 = vadd.f32 %v193, %v257
  %259 = vmatmul.f32.gmra.mxu0 %v42
  %v260 = vpop.f32.mrf.mxu0
  %v261 = vadd.f32 %v196, %v260
  %262 = vmatmul.f32.gmra.mxu0 %v45
  %v263 = vpop.f32.mrf.mxu0
  %v264 = vadd.f32 %v199, %v263
  %265 = vmatmul.f32.gmra.mxu0 %v48
  %v266 = vpop.f32.mrf.mxu0
  %v267 = vadd.f32 %v202, %v266
  %268 = vmatmul.f32.gmra.mxu0 %v51
  %v269 = vpop.f32.mrf.mxu0
  %v270 = vadd.f32 %v205, %v269
  %271 = vmatmul.f32.gmra.mxu0 %v54
  %v272 = vpop.f32.mrf.mxu0
  %v273 = vadd.f32 %v208, %v272
  %274 = vmatmul.f32.gmra.mxu0 %v57
  %v275 = vpop.f32.mrf.mxu0
  %v276 = vadd.f32 %v211, %v275
  %277 = vmatmul.f32.gmra.mxu0 %v60
  %v278 = vpop.f32.mrf.mxu0
  %v279 = vadd.f32 %v214, %v278
  %280 = vdwg.mxu0
  %281 = vmatpush.msra.mxu0 0.0
  %282 = vmatpush.msra.mxu0 0.0
  %283 = vmatpush.msra.mxu0 0.0
  %284 = vmatpush.msra.mxu0 0.0
  %285 = vmatpush.msra.mxu0 0.0
  %286 = vmatpush.msra.mxu0 0.0
  %287 = vmatpush.msra.mxu0 0.0
  %288 = vmatpush.msra.mxu0 0.0
  %289 = vmatpush.msra.mxu0 0.0
  %290 = vmatpush.msra.mxu0 0.0
  %291 = vmatpush.msra.mxu0 0.0
  %292 = vmatpush.msra.mxu0 0.0
  %293 = vmatpush.msra.mxu0 %v97
  %294 = vmatpush.msra.mxu0 %v96
  %295 = vmatpush.msra.mxu0 %v95
  %296 = vmatpush.msra.mxu0 %v94
  %297 = vmatmul.f32.gmra.mxu0 %v104
  %v298 = vpop.f32.mrf.mxu0
  %v299 = vadd.f32 %v234, %v298
  %300 = vmatmul.f32.gmra.mxu0 %v107
  %v301 = vpop.f32.mrf.mxu0
  %v302 = vadd.f32 %v237, %v301
  %303 = vmatmul.f32.gmra.mxu0 %v110
  %v304 = vpop.f32.mrf.mxu0
  %v305 = vadd.f32 %v240, %v304
  %306 = vmatmul.f32.gmra.mxu0 %v113
  %v307 = vpop.f32.mrf.mxu0
  %v308 = vadd.f32 %v243, %v307
  %309 = vmatmul.f32.gmra.mxu0 %v116
  %v310 = vpop.f32.mrf.mxu0
  %v311 = vadd.f32 %v246, %v310
  %312 = vmatmul.f32.gmra.mxu0 %v119
  %v313 = vpop.f32.mrf.mxu0
  %v314 = vadd.f32 %v249, %v313
  %315 = vmatmul.f32.gmra.mxu0 %v122
  %v316 = vpop.f32.mrf.mxu0
  %v317 = vadd.f32 %v252, %v316
  %318 = vmatmul.f32.gmra.mxu0 %v125
  %v319 = vpop.f32.mrf.mxu0
  %v320 = vadd.f32 %v255, %v319
  %321 = vmatmul.f32.gmra.mxu0 %v128
  %v322 = vpop.f32.mrf.mxu0
  %v323 = vadd.f32 %v258, %v322
  %324 = vmatmul.f32.gmra.mxu0 %v131
  %v325 = vpop.f32.mrf.mxu0
  %v326 = vadd.f32 %v261, %v325
  %327 = vmatmul.f32.gmra.mxu0 %v134
  %v328 = vpop.f32.mrf.mxu0
  %v329 = vadd.f32 %v264, %v328
  %330 = vmatmul.f32.gmra.mxu0 %v137
  %v331 = vpop.f32.mrf.mxu0
  %v332 = vadd.f32 %v267, %v331
  %333 = vmatmul.f32.gmra.mxu0 %v140
  %v334 = vpop.f32.mrf.mxu0
  %v335 = vadd.f32 %v270, %v334
  %336 = vmatmul.f32.gmra.mxu0 %v143
  %v337 = vpop.f32.mrf.mxu0
  %v338 = vadd.f32 %v273, %v337
  %339 = vmatmul.f32.gmra.mxu0 %v146
  %v340 = vpop.f32.mrf.mxu0
  %v341 = vadd.f32 %v276, %v340
  %342 = vmatmul.f32.gmra.mxu0 %v149
  %v343 = vpop.f32.mrf.mxu0
  %v344 = vadd.f32 %v279, %v343
  %345 = vdwg.mxu0
  %v346 = vmax.f32 %v299, 0.0
  %v347 = vmax.f32 %v302, 0.0
  %v348 = vmax.f32 %v305, 0.0
  %v349 = vmax.f32 %v308, 0.0
  %v350 = vmax.f32 %v311, 0.0
  %v351 = vmax.f32 %v314, 0.0
  %v352 = vmax.f32 %v317, 0.0
  %v353 = vmax.f32 %v320, 0.0
  %v354 = vmax.f32 %v323, 0.0
  %v355 = vmax.f32 %v326, 0.0
  %v356 = vmax.f32 %v329, 0.0
  %v357 = vmax.f32 %v332, 0.0
  %v358 = vmax.f32 %v335, 0.0
  %v359 = vmax.f32 %v338, 0.0
  %v360 = vmax.f32 %v341, 0.0
  %v361 = vmax.f32 %v344, 0.0
  %vm362 = vcmask 523264
  %363 = vst.msk [vmem:[%s3] sm:$0xff] %vm362, %v346
  %364 = vst.msk [vmem:[%s3 + $0x8] sm:$0xff] %vm362, %v347
  %365 = vst.msk [vmem:[%s3 + $0x10] sm:$0xff] %vm362, %v348
  %366 = vst.msk [vmem:[%s3 + $0x18] sm:$0xff] %vm362, %v349
  %367 = vst.msk [vmem:[%s3 + $0x20] sm:$0xff] %vm362, %v350
  %368 = vst.msk [vmem:[%s3 + $0x28] sm:$0xff] %vm362, %v351
  %369 = vst.msk [vmem:[%s3 + $0x30] sm:$0xff] %vm362, %v352
  %370 = vst.msk [vmem:[%s3 + $0x38] sm:$0xff] %vm362, %v353
  %371 = vst.msk [vmem:[%s3 + $0x40] sm:$0xff] %vm362, %v354
  %372 = vst.msk [vmem:[%s3 + $0x48] sm:$0xff] %vm362, %v355
  %373 = vst.msk [vmem:[%s3 + $0x50] sm:$0xff] %vm362, %v356
  %374 = vst.msk [vmem:[%s3 + $0x58] sm:$0xff] %vm362, %v357
  %375 = vst.msk [vmem:[%s3 + $0x60] sm:$0xff] %vm362, %v358
  %376 = vst.msk [vmem:[%s3 + $0x68] sm:$0xff] %vm362, %v359
  %377 = vst.msk [vmem:[%s3 + $0x70] sm:$0xff] %vm362, %v360
  %378 = vst.msk [vmem:[%s3 + $0x78] sm:$0xff] %vm362, %v361
  // Predicated region
  $region14: #{generator_forward.7} parent=0 // pred_check
    _
  $region15: #{generator_forward.7} parent=0 // pred_check_branch
    %380 = sbr.rel (0) target = $region17
  $region16: #{generator_forward.7} parent=0 // pred_region
    _
  $region17: #{generator_forward.7} parent=0 // pred_fallthru
    _
  // Predicated region
  $region18: #{generator_forward.7} parent=0 // pred_check
    _
  $region19: #{generator_forward.7} parent=0 // pred_check_branch
    %382 = sbr.rel (0) target = $region21
  $region20: #{generator_forward.7} parent=0 // pred_region
    _
  $region21: #{generator_forward.7} parent=0 // pred_fallthru
    _

// kernel: generator_forward.8
$region0: #{generator_forward.8}
  #allocation0 [shape = 'u32[]', space=smem, size = 0x4, offset = 0x4, fixed_abs, tag = 'smem constant byte address 0x4 - core index']
  #allocation1 [shape = 'u32[72,128]{1,0:T(1,128)}', space=vmem, size = 0x9000, scoped, tag = 'internal scratch']
  %s0 = inlined_call_operand.vmem [shape: f32[512,144], index: 0, kind: input, shape index: {}]
  %s1 = inlined_call_operand.vmem [shape: f32[144,32], index: 1, kind: input, shape index: {}]
  %s2 = inlined_call_operand.vmem [shape: f32[1,32], index: 2, kind: input, shape index: {}]
  %s3 = inlined_call_operand.vmem [shape: f32[512,32], index: 3, kind: output, shape index: {}]
  %s4 = sld [smem:[#allocation0]]
  $region22: #{generator_forward.8} parent=0
    _
  %s6 = ssub.s32 1, %s4
  %s7 = scalar_select 0, %s6, %s4
  // Predicated region
  $region2: #{generator_forward.8} parent=0 // pred_check
    _
  $region3: #{generator_forward.8} parent=0 // pred_check_branch
    %9 = sbr.rel (0) target = $region5
  $region4: #{generator_forward.8} parent=0 // pred_region
    _
  $region5: #{generator_forward.8} parent=0 // pred_fallthru
    _
  // Predicated region
  $region6: #{generator_forward.8} parent=0 // pred_check
    _
  $region7: #{generator_forward.8} parent=0 // pred_check_branch
    %11 = sbr.rel (0) target = $region9
  $region8: #{generator_forward.8} parent=0 // pred_region
    _
  $region9: #{generator_forward.8} parent=0 // pred_fallthru
    _
  // Predicated region
  $region10: #{generator_forward.8} parent=0 // pred_check
    _
  $region11: #{generator_forward.8} parent=0 // pred_check_branch
    %13 = sbr.rel (0) target = $region13
  $region12: #{generator_forward.8} parent=0 // pred_region
    _
  $region13: #{generator_forward.8} parent=0 // pred_fallthru
    _
  %v14 = vld [vmem:[%s0] sm:$0xff]
  %v15 = vld [vmem:[%s0 + $0x8] sm:$0xff]
  %v16 = vld [vmem:[%s0 + $0x10] sm:$0xff]
  %v17 = vld [vmem:[%s0 + $0x18] sm:$0xff]
  %v18 = vld [vmem:[%s0 + $0x20] sm:$0xff]
  %v19 = vld [vmem:[%s0 + $0x28] sm:$0xff]
  %v20 = vld [vmem:[%s0 + $0x30] sm:$0xff]
  %v21 = vld [vmem:[%s0 + $0x38] sm:$0xff]
  %v22 = vld [vmem:[%s0 + $0x40] sm:$0xff]
  %v23 = vld [vmem:[%s0 + $0x48] sm:$0xff]
  %v24 = vld [vmem:[%s0 + $0x50] sm:$0xff]
  %v25 = vld [vmem:[%s0 + $0x58] sm:$0xff]
  %v26 = vld [vmem:[%s0 + $0x60] sm:$0xff]
  %v27 = vld [vmem:[%s0 + $0x68] sm:$0xff]
  %v28 = vld [vmem:[%s0 + $0x70] sm:$0xff]
  %v29 = vld [vmem:[%s0 + $0x78] sm:$0xff]
  %v30 = vld [vmem:[%s0 + $0x80] sm:$0xff]
  %v31 = vld [vmem:[%s0 + $0x88] sm:$0xff]
  %v32 = vld [vmem:[%s0 + $0x90] sm:$0xff]
  %v33 = vld [vmem:[%s0 + $0x98] sm:$0xff]
  %v34 = vld [vmem:[%s0 + $0xa0] sm:$0xff]
  %v35 = vld [vmem:[%s0 + $0xa8] sm:$0xff]
  %v36 = vld [vmem:[%s0 + $0xb0] sm:$0xff]
  %v37 = vld [vmem:[%s0 + $0xb8] sm:$0xff]
  %v38 = vld [vmem:[%s0 + $0xc0] sm:$0xff]
  %v39 = vld [vmem:[%s0 + $0xc8] sm:$0xff]
  %v40 = vld [vmem:[%s0 + $0xd0] sm:$0xff]
  %v41 = vld [vmem:[%s0 + $0xd8] sm:$0xff]
  %v42 = vld [vmem:[%s0 + $0xe0] sm:$0xff]
  %v43 = vld [vmem:[%s0 + $0xe8] sm:$0xff]
  %v44 = vld [vmem:[%s0 + $0xf0] sm:$0xff]
  %v45 = vld [vmem:[%s0 + $0xf8] sm:$0xff]
  %v46 = vld [vmem:[%s0 + $0x100] sm:$0xff]
  %v47 = vld [vmem:[%s0 + $0x108] sm:$0xff]
  %v48 = vld [vmem:[%s0 + $0x110] sm:$0xff]
  %v49 = vld [vmem:[%s0 + $0x118] sm:$0xff]
  %v50 = vld [vmem:[%s0 + $0x120] sm:$0xff]
  %v51 = vld [vmem:[%s0 + $0x128] sm:$0xff]
  %v52 = vld [vmem:[%s0 + $0x130] sm:$0xff]
  %v53 = vld [vmem:[%s0 + $0x138] sm:$0xff]
  %v54 = vld [vmem:[%s0 + $0x140] sm:$0xff]
  %v55 = vld [vmem:[%s0 + $0x148] sm:$0xff]
  %v56 = vld [vmem:[%s0 + $0x150] sm:$0xff]
  %v57 = vld [vmem:[%s0 + $0x158] sm:$0xff]
  %v58 = vld [vmem:[%s0 + $0x160] sm:$0xff]
  %v59 = vld [vmem:[%s0 + $0x168] sm:$0xff]
  %v60 = vld [vmem:[%s0 + $0x170] sm:$0xff]
  %v61 = vld [vmem:[%s0 + $0x178] sm:$0xff]
  %v62 = vld [vmem:[%s0 + $0x180] sm:$0xff]
  %v63 = vld [vmem:[%s0 + $0x188] sm:$0xff]
  %v64 = vld [vmem:[%s0 + $0x190] sm:$0xff]
  %v65 = vld [vmem:[%s0 + $0x198] sm:$0xff]
  %v66 = vld [vmem:[%s0 + $0x1a0] sm:$0xff]
  %v67 = vld [vmem:[%s0 + $0x1a8] sm:$0xff]
  %v68 = vld [vmem:[%s0 + $0x1b0] sm:$0xff]
  %v69 = vld [vmem:[%s0 + $0x1b8] sm:$0xff]
  %v70 = vld [vmem:[%s0 + $0x1c0] sm:$0xff]
  %v71 = vld [vmem:[%s0 + $0x1c8] sm:$0xff]
  %v72 = vld [vmem:[%s0 + $0x1d0] sm:$0xff]
  %v73 = vld [vmem:[%s0 + $0x1d8] sm:$0xff]
  %v74 = vld [vmem:[%s0 + $0x1e0] sm:$0xff]
  %v75 = vld [vmem:[%s0 + $0x1e8] sm:$0xff]
  %v76 = vld [vmem:[%s0 + $0x1f0] sm:$0xff]
  %v77 = vld [vmem:[%s0 + $0x1f8] sm:$0xff]
  %v78 = vld [vmem:[%s0 + $0x200] sm:$0xff]
  %v79 = vld [vmem:[%s0 + $0x208] sm:$0xff]
  %v80 = vld [vmem:[%s0 + $0x210] sm:$0xff]
  %v81 = vld [vmem:[%s0 + $0x218] sm:$0xff]
  %v82 = vld [vmem:[%s0 + $0x220] sm:$0xff]
  %v83 = vld [vmem:[%s0 + $0x228] sm:$0xff]
  %v84 = vld [vmem:[%s0 + $0x230] sm:$0xff]
  %v85 = vld [vmem:[%s0 + $0x238] sm:$0xff]
  %v86 = vld [vmem:[%s0 + $0x240] sm:$0xff]
  %v87 = vld [vmem:[%s0 + $0x248] sm:$0xff]
  %v88 = vld [vmem:[%s0 + $0x250] sm:$0xff]
  %v89 = vld [vmem:[%s0 + $0x258] sm:$0xff]
  %v90 = vld [vmem:[%s0 + $0x260] sm:$0xff]
  %v91 = vld [vmem:[%s0 + $0x268] sm:$0xff]
  %v92 = vld [vmem:[%s0 + $0x270] sm:$0xff]
  %v93 = vld [vmem:[%s0 + $0x278] sm:$0xff]
  %v94 = vld [vmem:[%s0 + $0x280] sm:$0xff]
  %v95 = vld [vmem:[%s0 + $0x288] sm:$0xff]
  %v96 = vld [vmem:[%s0 + $0x290] sm:$0xff]
  %v97 = vld [vmem:[%s0 + $0x298] sm:$0xff]
  %v98 = vld [vmem:[%s0 + $0x2a0] sm:$0xff]
  %v99 = vld [vmem:[%s0 + $0x2a8] sm:$0xff]
  %v100 = vld [vmem:[%s0 + $0x2b0] sm:$0xff]
  %v101 = vld [vmem:[%s0 + $0x2b8] sm:$0xff]
  %v102 = vld [vmem:[%s0 + $0x2c0] sm:$0xff]
  %v103 = vld [vmem:[%s0 + $0x2c8] sm:$0xff]
  %v104 = vld [vmem:[%s0 + $0x2d0] sm:$0xff]
  %v105 = vld [vmem:[%s0 + $0x2d8] sm:$0xff]
  %v106 = vld [vmem:[%s0 + $0x2e0] sm:$0xff]
  %v107 = vld [vmem:[%s0 + $0x2e8] sm:$0xff]
  %v108 = vld [vmem:[%s0 + $0x2f0] sm:$0xff]
  %v109 = vld [vmem:[%s0 + $0x2f8] sm:$0xff]
  %v110 = vld [vmem:[%s0 + $0x300] sm:$0xff]
  %v111 = vld [vmem:[%s0 + $0x308] sm:$0xff]
  %v112 = vld [vmem:[%s0 + $0x310] sm:$0xff]
  %v113 = vld [vmem:[%s0 + $0x318] sm:$0xff]
  %v114 = vld [vmem:[%s0 + $0x320] sm:$0xff]
  %v115 = vld [vmem:[%s0 + $0x328] sm:$0xff]
  %v116 = vld [vmem:[%s0 + $0x330] sm:$0xff]
  %v117 = vld [vmem:[%s0 + $0x338] sm:$0xff]
  %v118 = vld [vmem:[%s0 + $0x340] sm:$0xff]
  %v119 = vld [vmem:[%s0 + $0x348] sm:$0xff]
  %v120 = vld [vmem:[%s0 + $0x350] sm:$0xff]
  %v121 = vld [vmem:[%s0 + $0x358] sm:$0xff]
  %v122 = vld [vmem:[%s0 + $0x360] sm:$0xff]
  %v123 = vld [vmem:[%s0 + $0x368] sm:$0xff]
  %v124 = vld [vmem:[%s0 + $0x370] sm:$0xff]
  %v125 = vld [vmem:[%s0 + $0x378] sm:$0xff]
  %v126 = vld [vmem:[%s0 + $0x380] sm:$0xff]
  %v127 = vld [vmem:[%s0 + $0x388] sm:$0xff]
  %v128 = vld [vmem:[%s0 + $0x390] sm:$0xff]
  %v129 = vld [vmem:[%s0 + $0x398] sm:$0xff]
  %v130 = vld [vmem:[%s0 + $0x3a0] sm:$0xff]
  %v131 = vld [vmem:[%s0 + $0x3a8] sm:$0xff]
  %v132 = vld [vmem:[%s0 + $0x3b0] sm:$0xff]
  %v133 = vld [vmem:[%s0 + $0x3b8] sm:$0xff]
  %v134 = vld [vmem:[%s0 + $0x3c0] sm:$0xff]
  %v135 = vld [vmem:[%s0 + $0x3c8] sm:$0xff]
  %v136 = vld [vmem:[%s0 + $0x3d0] sm:$0xff]
  %v137 = vld [vmem:[%s0 + $0x3d8] sm:$0xff]
  %v138 = vld [vmem:[%s0 + $0x3e0] sm:$0xff]
  %v139 = vld [vmem:[%s0 + $0x3e8] sm:$0xff]
  %v140 = vld [vmem:[%s0 + $0x3f0] sm:$0xff]
  %v141 = vld [vmem:[%s0 + $0x3f8] sm:$0xff]
  %v142 = vld [vmem:[%s1] sm:$0xff]
  %v143 = vld [vmem:[%s1 + $0x8] sm:$0xff]
  %v144 = vld [vmem:[%s1 + $0x10] sm:$0xff]
  %v145 = vld [vmem:[%s1 + $0x18] sm:$0xff]
  %v146 = vld [vmem:[%s1 + $0x20] sm:$0xff]
  %v147 = vld [vmem:[%s1 + $0x28] sm:$0xff]
  %v148 = vld [vmem:[%s1 + $0x30] sm:$0xff]
  %v149 = vld [vmem:[%s1 + $0x38] sm:$0xff]
  %v150 = vld [vmem:[%s1 + $0x40] sm:$0xff]
  %v151 = vld [vmem:[%s1 + $0x48] sm:$0xff]
  %v152 = vld [vmem:[%s1 + $0x50] sm:$0xff]
  %v153 = vld [vmem:[%s1 + $0x58] sm:$0xff]
  %v154 = vld [vmem:[%s1 + $0x60] sm:$0xff]
  %v155 = vld [vmem:[%s1 + $0x68] sm:$0xff]
  %v156 = vld [vmem:[%s1 + $0x70] sm:$0xff]
  %v157 = vld [vmem:[%s1 + $0x78] sm:$0xff]
  %v158 = vld [vmem:[%s1 + $0x80] sm:$0xff]
  %v159 = vld [vmem:[%s1 + $0x88] sm:$0xff]
  %v160 = vld [vmem:[%s2] sm:$0x1]
  %v162 = vperm.slane %v160, 0
  %vm164 = vcmask 130048
  %v166 = vsel %vm164, %v15, 0
  %v169 = vsel %vm164, %v17, 0
  %v172 = vsel %vm164, %v19, 0
  %v175 = vsel %vm164, %v21, 0
  %v178 = vsel %vm164, %v23, 0
  %v181 = vsel %vm164, %v25, 0
  %v184 = vsel %vm164, %v27, 0
  %v187 = vsel %vm164, %v29, 0
  %v190 = vsel %vm164, %v31, 0
  %v193 = vsel %vm164, %v33, 0
  %v196 = vsel %vm164, %v35, 0
  %v199 = vsel %vm164, %v37, 0
  %v202 = vsel %vm164, %v39, 0
  %v205 = vsel %vm164, %v41, 0
  %v208 = vsel %vm164, %v43, 0
  %v211 = vsel %vm164, %v45, 0
  %v214 = vsel %vm164, %v47, 0
  %v217 = vsel %vm164, %v49, 0
  %v220 = vsel %vm164, %v51, 0
  %v223 = vsel %vm164, %v53, 0
  %v226 = vsel %vm164, %v55, 0
  %v229 = vsel %vm164, %v57, 0
  %v232 = vsel %vm164, %v59, 0
  %v235 = vsel %vm164, %v61, 0
  %v238 = vsel %vm164, %v63, 0
  %v241 = vsel %vm164, %v65, 0
  %v244 = vsel %vm164, %v67, 0
  %v247 = vsel %vm164, %v69, 0
  %v250 = vsel %vm164, %v71, 0
  %v253 = vsel %vm164, %v73, 0
  %v256 = vsel %vm164, %v75, 0
  %v259 = vsel %vm164, %v77, 0
  %v262 = vsel %vm164, %v79, 0
  %v265 = vsel %vm164, %v81, 0
  %v268 = vsel %vm164, %v83, 0
  %v271 = vsel %vm164, %v85, 0
  %v274 = vsel %vm164, %v87, 0
  %v277 = vsel %vm164, %v89, 0
  %v280 = vsel %vm164, %v91, 0
  %v283 = vsel %vm164, %v93, 0
  %v286 = vsel %vm164, %v95, 0
  %v289 = vsel %vm164, %v97, 0
  %v292 = vsel %vm164, %v99, 0
  %v295 = vsel %vm164, %v101, 0
  %v298 = vsel %vm164, %v103, 0
  %v301 = vsel %vm164, %v105, 0
  %v304 = vsel %vm164, %v107, 0
  %v307 = vsel %vm164, %v109, 0
  %v310 = vsel %vm164, %v111, 0
  %v313 = vsel %vm164, %v113, 0
  %v316 = vsel %vm164, %v115, 0
  %v319 = vsel %vm164, %v117, 0
  %v322 = vsel %vm164, %v119, 0
  %v325 = vsel %vm164, %v121, 0
  %v328 = vsel %vm164, %v123, 0
  %v331 = vsel %vm164, %v125, 0
  %v334 = vsel %vm164, %v127, 0
  %v337 = vsel %vm164, %v129, 0
  %v340 = vsel %vm164, %v131, 0
  %v343 = vsel %vm164, %v133, 0
  %v346 = vsel %vm164, %v135, 0
  %v349 = vsel %vm164, %v137, 0
  %v352 = vsel %vm164, %v139, 0
  %v355 = vsel %vm164, %v141, 0
  %357 = vmatpush.msra.mxu0 %v157
  %358 = vmatpush.msra.mxu0 %v156
  %359 = vmatpush.msra.mxu0 %v155
  %360 = vmatpush.msra.mxu0 %v154
  %361 = vmatpush.msra.mxu0 %v153
  %362 = vmatpush.msra.mxu0 %v152
  %363 = vmatpush.msra.mxu0 %v151
  %364 = vmatpush.msra.mxu0 %v150
  %365 = vmatpush.msra.mxu0 %v149
  %366 = vmatpush.msra.mxu0 %v148
  %367 = vmatpush.msra.mxu0 %v147
  %368 = vmatpush.msra.mxu0 %v146
  %369 = vmatpush.msra.mxu0 %v145
  %370 = vmatpush.msra.mxu0 %v144
  %371 = vmatpush.msra.mxu0 %v143
  %372 = vmatpush.msra.mxu0 %v142
  %373 = vmatmul.f32.gmra.mxu0 %v14
  %v374 = vpop.f32.mrf.mxu0
  %v375 = vadd.f32 %v162, %v374
  %376 = vmatmul.f32.gmra.mxu0 %v16
  %v377 = vpop.f32.mrf.mxu0
  %v378 = vadd.f32 %v162, %v377
  %379 = vmatmul.f32.gmra.mxu0 %v18
  %v380 = vpop.f32.mrf.mxu0
  %v381 = vadd.f32 %v162, %v380
  %382 = vmatmul.f32.gmra.mxu0 %v20
  %v383 = vpop.f32.mrf.mxu0
  %v384 = vadd.f32 %v162, %v383
  %385 = vmatmul.f32.gmra.mxu0 %v22
  %v386 = vpop.f32.mrf.mxu0
  %v387 = vadd.f32 %v162, %v386
  %388 = vmatmul.f32.gmra.mxu0 %v24
  %v389 = vpop.f32.mrf.mxu0
  %v390 = vadd.f32 %v162, %v389
  %391 = vmatmul.f32.gmra.mxu0 %v26
  %v392 = vpop.f32.mrf.mxu0
  %v393 = vadd.f32 %v162, %v392
  %394 = vmatmul.f32.gmra.mxu0 %v28
  %v395 = vpop.f32.mrf.mxu0
  %v396 = vadd.f32 %v162, %v395
  %397 = vmatmul.f32.gmra.mxu0 %v30
  %v398 = vpop.f32.mrf.mxu0
  %v399 = vadd.f32 %v162, %v398
  %400 = vmatmul.f32.gmra.mxu0 %v32
  %v401 = vpop.f32.mrf.mxu0
  %v402 = vadd.f32 %v162, %v401
  %403 = vmatmul.f32.gmra.mxu0 %v34
  %v404 = vpop.f32.mrf.mxu0
  %v405 = vadd.f32 %v162, %v404
  %406 = vmatmul.f32.gmra.mxu0 %v36
  %v407 = vpop.f32.mrf.mxu0
  %v408 = vadd.f32 %v162, %v407
  %409 = vmatmul.f32.gmra.mxu0 %v38
  %v410 = vpop.f32.mrf.mxu0
  %v411 = vadd.f32 %v162, %v410
  %412 = vmatmul.f32.gmra.mxu0 %v40
  %v413 = vpop.f32.mrf.mxu0
  %v414 = vadd.f32 %v162, %v413
  %415 = vmatmul.f32.gmra.mxu0 %v42
  %v416 = vpop.f32.mrf.mxu0
  %v417 = vadd.f32 %v162, %v416
  %418 = vmatmul.f32.gmra.mxu0 %v44
  %v419 = vpop.f32.mrf.mxu0
  %v420 = vadd.f32 %v162, %v419
  %421 = vmatmul.f32.gmra.mxu0 %v46
  %v422 = vpop.f32.mrf.mxu0
  %v423 = vadd.f32 %v162, %v422
  %424 = vmatmul.f32.gmra.mxu0 %v48
  %v425 = vpop.f32.mrf.mxu0
  %v426 = vadd.f32 %v162, %v425
  %427 = vmatmul.f32.gmra.mxu0 %v50
  %v428 = vpop.f32.mrf.mxu0
  %v429 = vadd.f32 %v162, %v428
  %430 = vmatmul.f32.gmra.mxu0 %v52
  %v431 = vpop.f32.mrf.mxu0
  %v432 = vadd.f32 %v162, %v431
  %433 = vmatmul.f32.gmra.mxu0 %v54
  %v434 = vpop.f32.mrf.mxu0
  %v435 = vadd.f32 %v162, %v434
  %436 = vmatmul.f32.gmra.mxu0 %v56
  %v437 = vpop.f32.mrf.mxu0
  %v438 = vadd.f32 %v162, %v437
  %439 = vmatmul.f32.gmra.mxu0 %v58
  %v440 = vpop.f32.mrf.mxu0
  %v441 = vadd.f32 %v162, %v440
  %442 = vmatmul.f32.gmra.mxu0 %v60
  %v443 = vpop.f32.mrf.mxu0
  %v444 = vadd.f32 %v162, %v443
  %445 = vmatmul.f32.gmra.mxu0 %v62
  %v446 = vpop.f32.mrf.mxu0
  %v447 = vadd.f32 %v162, %v446
  %448 = vmatmul.f32.gmra.mxu0 %v64
  %v449 = vpop.f32.mrf.mxu0
  %v450 = vadd.f32 %v162, %v449
  %451 = vmatmul.f32.gmra.mxu0 %v66
  %v452 = vpop.f32.mrf.mxu0
  %v453 = vadd.f32 %v162, %v452
  %454 = vmatmul.f32.gmra.mxu0 %v68
  %v455 = vpop.f32.mrf.mxu0
  %v456 = vadd.f32 %v162, %v455
  %457 = vmatmul.f32.gmra.mxu0 %v70
  %v458 = vpop.f32.mrf.mxu0
  %v459 = vadd.f32 %v162, %v458
  %460 = vmatmul.f32.gmra.mxu0 %v72
  %v461 = vpop.f32.mrf.mxu0
  %v462 = vadd.f32 %v162, %v461
  %463 = vmatmul.f32.gmra.mxu0 %v74
  %v464 = vpop.f32.mrf.mxu0
  %v465 = vadd.f32 %v162, %v464
  %466 = vmatmul.f32.gmra.mxu0 %v76
  %v467 = vpop.f32.mrf.mxu0
  %v468 = vadd.f32 %v162, %v467
  %469 = vmatmul.f32.gmra.mxu0 %v78
  %v470 = vpop.f32.mrf.mxu0
  %v471 = vadd.f32 %v162, %v470
  %472 = vmatmul.f32.gmra.mxu0 %v80
  %v473 = vpop.f32.mrf.mxu0
  %v474 = vadd.f32 %v162, %v473
  %475 = vmatmul.f32.gmra.mxu0 %v82
  %v476 = vpop.f32.mrf.mxu0
  %v477 = vadd.f32 %v162, %v476
  %478 = vmatmul.f32.gmra.mxu0 %v84
  %v479 = vpop.f32.mrf.mxu0
  %v480 = vadd.f32 %v162, %v479
  %481 = vmatmul.f32.gmra.mxu0 %v86
  %v482 = vpop.f32.mrf.mxu0
  %v483 = vadd.f32 %v162, %v482
  %484 = vmatmul.f32.gmra.mxu0 %v88
  %v485 = vpop.f32.mrf.mxu0
  %v486 = vadd.f32 %v162, %v485
  %487 = vmatmul.f32.gmra.mxu0 %v90
  %v488 = vpop.f32.mrf.mxu0
  %v489 = vadd.f32 %v162, %v488
  %490 = vmatmul.f32.gmra.mxu0 %v92
  %v491 = vpop.f32.mrf.mxu0
  %v492 = vadd.f32 %v162, %v491
  %493 = vmatmul.f32.gmra.mxu0 %v94
  %v494 = vpop.f32.mrf.mxu0
  %v495 = vadd.f32 %v162, %v494
  %496 = vmatmul.f32.gmra.mxu0 %v96
  %v497 = vpop.f32.mrf.mxu0
  %v498 = vadd.f32 %v162, %v497
  %499 = vmatmul.f32.gmra.mxu0 %v98
  %v500 = vpop.f32.mrf.mxu0
  %v501 = vadd.f32 %v162, %v500
  %502 = vmatmul.f32.gmra.mxu0 %v100
  %v503 = vpop.f32.mrf.mxu0
  %v504 = vadd.f32 %v162, %v503
  %505 = vmatmul.f32.gmra.mxu0 %v102
  %v506 = vpop.f32.mrf.mxu0
  %v507 = vadd.f32 %v162, %v506
  %508 = vmatmul.f32.gmra.mxu0 %v104
  %v509 = vpop.f32.mrf.mxu0
  %v510 = vadd.f32 %v162, %v509
  %511 = vmatmul.f32.gmra.mxu0 %v106
  %v512 = vpop.f32.mrf.mxu0
  %v513 = vadd.f32 %v162, %v512
  %514 = vmatmul.f32.gmra.mxu0 %v108
  %v515 = vpop.f32.mrf.mxu0
  %v516 = vadd.f32 %v162, %v515
  %517 = vmatmul.f32.gmra.mxu0 %v110
  %v518 = vpop.f32.mrf.mxu0
  %v519 = vadd.f32 %v162, %v518
  %520 = vmatmul.f32.gmra.mxu0 %v112
  %v521 = vpop.f32.mrf.mxu0
  %v522 = vadd.f32 %v162, %v521
  %523 = vmatmul.f32.gmra.mxu0 %v114
  %v524 = vpop.f32.mrf.mxu0
  %v525 = vadd.f32 %v162, %v524
  %526 = vmatmul.f32.gmra.mxu0 %v116
  %v527 = vpop.f32.mrf.mxu0
  %v528 = vadd.f32 %v162, %v527
  %529 = vmatmul.f32.gmra.mxu0 %v118
  %v530 = vpop.f32.mrf.mxu0
  %v531 = vadd.f32 %v162, %v530
  %532 = vmatmul.f32.gmra.mxu0 %v120
  %v533 = vpop.f32.mrf.mxu0
  %v534 = vadd.f32 %v162, %v533
  %535 = vmatmul.f32.gmra.mxu0 %v122
  %v536 = vpop.f32.mrf.mxu0
  %v537 = vadd.f32 %v162, %v536
  %538 = vmatmul.f32.gmra.mxu0 %v124
  %v539 = vpop.f32.mrf.mxu0
  %v540 = vadd.f32 %v162, %v539
  %541 = vmatmul.f32.gmra.mxu0 %v126
  %v542 = vpop.f32.mrf.mxu0
  %v543 = vadd.f32 %v162, %v542
  %544 = vmatmul.f32.gmra.mxu0 %v128
  %v545 = vpop.f32.mrf.mxu0
  %v546 = vadd.f32 %v162, %v545
  %547 = vmatmul.f32.gmra.mxu0 %v130
  %v548 = vpop.f32.mrf.mxu0
  %v549 = vadd.f32 %v162, %v548
  %550 = vmatmul.f32.gmra.mxu0 %v132
  %v551 = vpop.f32.mrf.mxu0
  %v552 = vadd.f32 %v162, %v551
  %553 = vmatmul.f32.gmra.mxu0 %v134
  %v554 = vpop.f32.mrf.mxu0
  %v555 = vadd.f32 %v162, %v554
  %556 = vmatmul.f32.gmra.mxu0 %v136
  %v557 = vpop.f32.mrf.mxu0
  %v558 = vadd.f32 %v162, %v557
  %559 = vmatmul.f32.gmra.mxu0 %v138
  %v560 = vpop.f32.mrf.mxu0
  %v561 = vadd.f32 %v162, %v560
  %562 = vmatmul.f32.gmra.mxu0 %v140
  %v563 = vpop.f32.mrf.mxu0
  %v564 = vadd.f32 %v162, %v563
  %565 = vdwg.mxu0
  %566 = vmatpush.msra.mxu0 0.0
  %567 = vmatpush.msra.mxu0 0.0
  %568 = vmatpush.msra.mxu0 0.0
  %569 = vmatpush.msra.mxu0 0.0
  %570 = vmatpush.msra.mxu0 0.0
  %571 = vmatpush.msra.mxu0 0.0
  %572 = vmatpush.msra.mxu0 0.0
  %573 = vmatpush.msra.mxu0 0.0
  %574 = vmatpush.msra.mxu0 0.0
  %575 = vmatpush.msra.mxu0 0.0
  %576 = vmatpush.msra.mxu0 0.0
  %577 = vmatpush.msra.mxu0 0.0
  %578 = vmatpush.msra.mxu0 0.0
  %579 = vmatpush.msra.mxu0 0.0
  %580 = vmatpush.msra.mxu0 %v159
  %581 = vmatpush.msra.mxu0 %v158
  %582 = vmatmul.f32.gmra.mxu0 %v166
  %v583 = vpop.f32.mrf.mxu0
  %v584 = vadd.f32 %v375, %v583
  %585 = vmatmul.f32.gmra.mxu0 %v169
  %v586 = vpop.f32.mrf.mxu0
  %v587 = vadd.f32 %v378, %v586
  %588 = vmatmul.f32.gmra.mxu0 %v172
  %v589 = vpop.f32.mrf.mxu0
  %v590 = vadd.f32 %v381, %v589
  %591 = vmatmul.f32.gmra.mxu0 %v175
  %v592 = vpop.f32.mrf.mxu0
  %v593 = vadd.f32 %v384, %v592
  %594 = vmatmul.f32.gmra.mxu0 %v178
  %v595 = vpop.f32.mrf.mxu0
  %v596 = vadd.f32 %v387, %v595
  %597 = vmatmul.f32.gmra.mxu0 %v181
  %v598 = vpop.f32.mrf.mxu0
  %v599 = vadd.f32 %v390, %v598
  %600 = vmatmul.f32.gmra.mxu0 %v184
  %v601 = vpop.f32.mrf.mxu0
  %v602 = vadd.f32 %v393, %v601
  %603 = vmatmul.f32.gmra.mxu0 %v187
  %v604 = vpop.f32.mrf.mxu0
  %v605 = vadd.f32 %v396, %v604
  %606 = vmatmul.f32.gmra.mxu0 %v190
  %v607 = vpop.f32.mrf.mxu0
  %v608 = vadd.f32 %v399, %v607
  %609 = vmatmul.f32.gmra.mxu0 %v193
  %v610 = vpop.f32.mrf.mxu0
  %v611 = vadd.f32 %v402, %v610
  %612 = vmatmul.f32.gmra.mxu0 %v196
  %v613 = vpop.f32.mrf.mxu0
  %v614 = vadd.f32 %v405, %v613
  %615 = vmatmul.f32.gmra.mxu0 %v199
  %v616 = vpop.f32.mrf.mxu0
  %v617 = vadd.f32 %v408, %v616
  %618 = vmatmul.f32.gmra.mxu0 %v202
  %v619 = vpop.f32.mrf.mxu0
  %v620 = vadd.f32 %v411, %v619
  %621 = vmatmul.f32.gmra.mxu0 %v205
  %v622 = vpop.f32.mrf.mxu0
  %v623 = vadd.f32 %v414, %v622
  %624 = vmatmul.f32.gmra.mxu0 %v208
  %v625 = vpop.f32.mrf.mxu0
  %v626 = vadd.f32 %v417, %v625
  %627 = vmatmul.f32.gmra.mxu0 %v211
  %v628 = vpop.f32.mrf.mxu0
  %v629 = vadd.f32 %v420, %v628
  %630 = vmatmul.f32.gmra.mxu0 %v214
  %v631 = vpop.f32.mrf.mxu0
  %v632 = vadd.f32 %v423, %v631
  %633 = vmatmul.f32.gmra.mxu0 %v217
  %v634 = vpop.f32.mrf.mxu0
  %v635 = vadd.f32 %v426, %v634
  %636 = vmatmul.f32.gmra.mxu0 %v220
  %v637 = vpop.f32.mrf.mxu0
  %v638 = vadd.f32 %v429, %v637
  %639 = vmatmul.f32.gmra.mxu0 %v223
  %v640 = vpop.f32.mrf.mxu0
  %v641 = vadd.f32 %v432, %v640
  %642 = vmatmul.f32.gmra.mxu0 %v226
  %v643 = vpop.f32.mrf.mxu0
  %v644 = vadd.f32 %v435, %v643
  %645 = vmatmul.f32.gmra.mxu0 %v229
  %v646 = vpop.f32.mrf.mxu0
  %v647 = vadd.f32 %v438, %v646
  %648 = vmatmul.f32.gmra.mxu0 %v232
  %v649 = vpop.f32.mrf.mxu0
  %v650 = vadd.f32 %v441, %v649
  %651 = vmatmul.f32.gmra.mxu0 %v235
  %v652 = vpop.f32.mrf.mxu0
  %v653 = vadd.f32 %v444, %v652
  %654 = vmatmul.f32.gmra.mxu0 %v238
  %v655 = vpop.f32.mrf.mxu0
  %v656 = vadd.f32 %v447, %v655
  %657 = vmatmul.f32.gmra.mxu0 %v241
  %v658 = vpop.f32.mrf.mxu0
  %v659 = vadd.f32 %v450, %v658
  %660 = vmatmul.f32.gmra.mxu0 %v244
  %v661 = vpop.f32.mrf.mxu0
  %v662 = vadd.f32 %v453, %v661
  %663 = vmatmul.f32.gmra.mxu0 %v247
  %v664 = vpop.f32.mrf.mxu0
  %v665 = vadd.f32 %v456, %v664
  %666 = vmatmul.f32.gmra.mxu0 %v250
  %v667 = vpop.f32.mrf.mxu0
  %v668 = vadd.f32 %v459, %v667
  %669 = vmatmul.f32.gmra.mxu0 %v253
  %v670 = vpop.f32.mrf.mxu0
  %v671 = vadd.f32 %v462, %v670
  %672 = vmatmul.f32.gmra.mxu0 %v256
  %v673 = vpop.f32.mrf.mxu0
  %v674 = vadd.f32 %v465, %v673
  %675 = vmatmul.f32.gmra.mxu0 %v259
  %v676 = vpop.f32.mrf.mxu0
  %v677 = vadd.f32 %v468, %v676
  %678 = vmatmul.f32.gmra.mxu0 %v262
  %v679 = vpop.f32.mrf.mxu0
  %v680 = vadd.f32 %v471, %v679
  %681 = vmatmul.f32.gmra.mxu0 %v265
  %v682 = vpop.f32.mrf.mxu0
  %v683 = vadd.f32 %v474, %v682
  %684 = vmatmul.f32.gmra.mxu0 %v268
  %v685 = vpop.f32.mrf.mxu0
  %v686 = vadd.f32 %v477, %v685
  %687 = vmatmul.f32.gmra.mxu0 %v271
  %v688 = vpop.f32.mrf.mxu0
  %v689 = vadd.f32 %v480, %v688
  %690 = vmatmul.f32.gmra.mxu0 %v274
  %v691 = vpop.f32.mrf.mxu0
  %v692 = vadd.f32 %v483, %v691
  %693 = vmatmul.f32.gmra.mxu0 %v277
  %v694 = vpop.f32.mrf.mxu0
  %v695 = vadd.f32 %v486, %v694
  %696 = vmatmul.f32.gmra.mxu0 %v280
  %v697 = vpop.f32.mrf.mxu0
  %v698 = vadd.f32 %v489, %v697
  %699 = vmatmul.f32.gmra.mxu0 %v283
  %v700 = vpop.f32.mrf.mxu0
  %v701 = vadd.f32 %v492, %v700
  %702 = vmatmul.f32.gmra.mxu0 %v286
  %v703 = vpop.f32.mrf.mxu0
  %v704 = vadd.f32 %v495, %v703
  %705 = vmatmul.f32.gmra.mxu0 %v289
  %v706 = vpop.f32.mrf.mxu0
  %v707 = vadd.f32 %v498, %v706
  %708 = vmatmul.f32.gmra.mxu0 %v292
  %v709 = vpop.f32.mrf.mxu0
  %v710 = vadd.f32 %v501, %v709
  %711 = vmatmul.f32.gmra.mxu0 %v295
  %v712 = vpop.f32.mrf.mxu0
  %v713 = vadd.f32 %v504, %v712
  %714 = vmatmul.f32.gmra.mxu0 %v298
  %v715 = vpop.f32.mrf.mxu0
  %v716 = vadd.f32 %v507, %v715
  %717 = vmatmul.f32.gmra.mxu0 %v301
  %v718 = vpop.f32.mrf.mxu0
  %v719 = vadd.f32 %v510, %v718
  %720 = vmatmul.f32.gmra.mxu0 %v304
  %v721 = vpop.f32.mrf.mxu0
  %v722 = vadd.f32 %v513, %v721
  %723 = vmatmul.f32.gmra.mxu0 %v307
  %v724 = vpop.f32.mrf.mxu0
  %v725 = vadd.f32 %v516, %v724
  %726 = vmatmul.f32.gmra.mxu0 %v310
  %v727 = vpop.f32.mrf.mxu0
  %v728 = vadd.f32 %v519, %v727
  %729 = vmatmul.f32.gmra.mxu0 %v313
  %v730 = vpop.f32.mrf.mxu0
  %v731 = vadd.f32 %v522, %v730
  %732 = vmatmul.f32.gmra.mxu0 %v316
  %v733 = vpop.f32.mrf.mxu0
  %v734 = vadd.f32 %v525, %v733
  %735 = vmatmul.f32.gmra.mxu0 %v319
  %v736 = vpop.f32.mrf.mxu0
  %v737 = vadd.f32 %v528, %v736
  %738 = vmatmul.f32.gmra.mxu0 %v322
  %v739 = vpop.f32.mrf.mxu0
  %v740 = vadd.f32 %v531, %v739
  %741 = vmatmul.f32.gmra.mxu0 %v325
  %v742 = vpop.f32.mrf.mxu0
  %v743 = vadd.f32 %v534, %v742
  %744 = vmatmul.f32.gmra.mxu0 %v328
  %v745 = vpop.f32.mrf.mxu0
  %v746 = vadd.f32 %v537, %v745
  %747 = vmatmul.f32.gmra.mxu0 %v331
  %v748 = vpop.f32.mrf.mxu0
  %v749 = vadd.f32 %v540, %v748
  %750 = vmatmul.f32.gmra.mxu0 %v334
  %v751 = vpop.f32.mrf.mxu0
  %v752 = vadd.f32 %v543, %v751
  %753 = vmatmul.f32.gmra.mxu0 %v337
  %v754 = vpop.f32.mrf.mxu0
  %v755 = vadd.f32 %v546, %v754
  %756 = vmatmul.f32.gmra.mxu0 %v340
  %v757 = vpop.f32.mrf.mxu0
  %v758 = vadd.f32 %v549, %v757
  %759 = vmatmul.f32.gmra.mxu0 %v343
  %v760 = vpop.f32.mrf.mxu0
  %v761 = vadd.f32 %v552, %v760
  %762 = vmatmul.f32.gmra.mxu0 %v346
  %v763 = vpop.f32.mrf.mxu0
  %v764 = vadd.f32 %v555, %v763
  %765 = vmatmul.f32.gmra.mxu0 %v349
  %v766 = vpop.f32.mrf.mxu0
  %v767 = vadd.f32 %v558, %v766
  %768 = vmatmul.f32.gmra.mxu0 %v352
  %v769 = vpop.f32.mrf.mxu0
  %v770 = vadd.f32 %v561, %v769
  %771 = vmatmul.f32.gmra.mxu0 %v355
  %v772 = vpop.f32.mrf.mxu0
  %v773 = vadd.f32 %v564, %v772
  %774 = vdwg.mxu0
  %v775 = vmax.f32 %v584, 0.0
  %v776 = vmax.f32 %v587, 0.0
  %v777 = vmax.f32 %v590, 0.0
  %v778 = vmax.f32 %v593, 0.0
  %v779 = vmax.f32 %v596, 0.0
  %v780 = vmax.f32 %v599, 0.0
  %v781 = vmax.f32 %v602, 0.0
  %v782 = vmax.f32 %v605, 0.0
  %v783 = vmax.f32 %v608, 0.0
  %v784 = vmax.f32 %v611, 0.0
  %v785 = vmax.f32 %v614, 0.0
  %v786 = vmax.f32 %v617, 0.0
  %v787 = vmax.f32 %v620, 0.0
  %v788 = vmax.f32 %v623, 0.0
  %v789 = vmax.f32 %v626, 0.0
  %v790 = vmax.f32 %v629, 0.0
  %v791 = vmax.f32 %v632, 0.0
  %v792 = vmax.f32 %v635, 0.0
  %v793 = vmax.f32 %v638, 0.0
  %v794 = vmax.f32 %v641, 0.0
  %v795 = vmax.f32 %v644, 0.0
  %v796 = vmax.f32 %v647, 0.0
  %v797 = vmax.f32 %v650, 0.0
  %v798 = vmax.f32 %v653, 0.0
  %v799 = vmax.f32 %v656, 0.0
  %v800 = vmax.f32 %v659, 0.0
  %v801 = vmax.f32 %v662, 0.0
  %v802 = vmax.f32 %v665, 0.0
  %v803 = vmax.f32 %v668, 0.0
  %v804 = vmax.f32 %v671, 0.0
  %v805 = vmax.f32 %v674, 0.0
  %v806 = vmax.f32 %v677, 0.0
  %v807 = vmax.f32 %v680, 0.0
  %v808 = vmax.f32 %v683, 0.0
  %v809 = vmax.f32 %v686, 0.0
  %v810 = vmax.f32 %v689, 0.0
  %v811 = vmax.f32 %v692, 0.0
  %v812 = vmax.f32 %v695, 0.0
  %v813 = vmax.f32 %v698, 0.0
  %v814 = vmax.f32 %v701, 0.0
  %v815 = vmax.f32 %v704, 0.0
  %v816 = vmax.f32 %v707, 0.0
  %v817 = vmax.f32 %v710, 0.0
  %v818 = vmax.f32 %v713, 0.0
  %v819 = vmax.f32 %v716, 0.0
  %v820 = vmax.f32 %v719, 0.0
  %v821 = vmax.f32 %v722, 0.0
  %v822 = vmax.f32 %v725, 0.0
  %v823 = vmax.f32 %v728, 0.0
  %v824 = vmax.f32 %v731, 0.0
  %v825 = vmax.f32 %v734, 0.0
  %v826 = vmax.f32 %v737, 0.0
  %v827 = vmax.f32 %v740, 0.0
  %v828 = vmax.f32 %v743, 0.0
  %v829 = vmax.f32 %v746, 0.0
  %v830 = vmax.f32 %v749, 0.0
  %v831 = vmax.f32 %v752, 0.0
  %v832 = vmax.f32 %v755, 0.0
  %v833 = vmax.f32 %v758, 0.0
  %v834 = vmax.f32 %v761, 0.0
  %v835 = vmax.f32 %v764, 0.0
  %v836 = vmax.f32 %v767, 0.0
  %v837 = vmax.f32 %v770, 0.0
  %v838 = vmax.f32 %v773, 0.0
  %vm839 = vcmask 261120
  %840 = vst.msk [vmem:[%s3] sm:$0xff] %vm839, %v775
  %841 = vst.msk [vmem:[%s3 + $0x8] sm:$0xff] %vm839, %v776
  %842 = vst.msk [vmem:[%s3 + $0x10] sm:$0xff] %vm839, %v777
  %843 = vst.msk [vmem:[%s3 + $0x18] sm:$0xff] %vm839, %v778
  %844 = vst.msk [vmem:[%s3 + $0x20] sm:$0xff] %vm839, %v779
  %845 = vst.msk [vmem:[%s3 + $0x28] sm:$0xff] %vm839, %v780
  %846 = vst.msk [vmem:[%s3 + $0x30] sm:$0xff] %vm839, %v781
  %847 = vst.msk [vmem:[%s3 + $0x38] sm:$0xff] %vm839, %v782
  %848 = vst.msk [vmem:[%s3 + $0x40] sm:$0xff] %vm839, %v783
  %849 = vst.msk [vmem:[%s3 + $0x48] sm:$0xff] %vm839, %v784
  %850 = vst.msk [vmem:[%s3 + $0x50] sm:$0xff] %vm839, %v785
  %851 = vst.msk [vmem:[%s3 + $0x58] sm:$0xff] %vm839, %v786
  %852 = vst.msk [vmem:[%s3 + $0x60] sm:$0xff] %vm839, %v787
  %853 = vst.msk [vmem:[%s3 + $0x68] sm:$0xff] %vm839, %v788
  %854 = vst.msk [vmem:[%s3 + $0x70] sm:$0xff] %vm839, %v789
  %855 = vst.msk [vmem:[%s3 + $0x78] sm:$0xff] %vm839, %v790
  %856 = vst.msk [vmem:[%s3 + $0x80] sm:$0xff] %vm839, %v791
  %857 = vst.msk [vmem:[%s3 + $0x88] sm:$0xff] %vm839, %v792
  %858 = vst.msk [vmem:[%s3 + $0x90] sm:$0xff] %vm839, %v793
  %859 = vst.msk [vmem:[%s3 + $0x98] sm:$0xff] %vm839, %v794
  %860 = vst.msk [vmem:[%s3 + $0xa0] sm:$0xff] %vm839, %v795
  %861 = vst.msk [vmem:[%s3 + $0xa8] sm:$0xff] %vm839, %v796
  %862 = vst.msk [vmem:[%s3 + $0xb0] sm:$0xff] %vm839, %v797
  %863 = vst.msk [vmem:[%s3 + $0xb8] sm:$0xff] %vm839, %v798
  %864 = vst.msk [vmem:[%s3 + $0xc0] sm:$0xff] %vm839, %v799
  %865 = vst.msk [vmem:[%s3 + $0xc8] sm:$0xff] %vm839, %v800
  %866 = vst.msk [vmem:[%s3 + $0xd0] sm:$0xff] %vm839, %v801
  %867 = vst.msk [vmem:[%s3 + $0xd8] sm:$0xff] %vm839, %v802
  %868 = vst.msk [vmem:[%s3 + $0xe0] sm:$0xff] %vm839, %v803
  %869 = vst.msk [vmem:[%s3 + $0xe8] sm:$0xff] %vm839, %v804
  %870 = vst.msk [vmem:[%s3 + $0xf0] sm:$0xff] %vm839, %v805
  %871 = vst.msk [vmem:[%s3 + $0xf8] sm:$0xff] %vm839, %v806
  %872 = vst.msk [vmem:[%s3 + $0x100] sm:$0xff] %vm839, %v807
  %873 = vst.msk [vmem:[%s3 + $0x108] sm:$0xff] %vm839, %v808
  %874 = vst.msk [vmem:[%s3 + $0x110] sm:$0xff] %vm839, %v809
  %875 = vst.msk [vmem:[%s3 + $0x118] sm:$0xff] %vm839, %v810
  %876 = vst.msk [vmem:[%s3 + $0x120] sm:$0xff] %vm839, %v811
  %877 = vst.msk [vmem:[%s3 + $0x128] sm:$0xff] %vm839, %v812
  %878 = vst.msk [vmem:[%s3 + $0x130] sm:$0xff] %vm839, %v813
  %879 = vst.msk [vmem:[%s3 + $0x138] sm:$0xff] %vm839, %v814
  %880 = vst.msk [vmem:[%s3 + $0x140] sm:$0xff] %vm839, %v815
  %881 = vst.msk [vmem:[%s3 + $0x148] sm:$0xff] %vm839, %v816
  %882 = vst.msk [vmem:[%s3 + $0x150] sm:$0xff] %vm839, %v817
  %883 = vst.msk [vmem:[%s3 + $0x158] sm:$0xff] %vm839, %v818
  %884 = vst.msk [vmem:[%s3 + $0x160] sm:$0xff] %vm839, %v819
  %885 = vst.msk [vmem:[%s3 + $0x168] sm:$0xff] %vm839, %v820
  %886 = vst.msk [vmem:[%s3 + $0x170] sm:$0xff] %vm839, %v821
  %887 = vst.msk [vmem:[%s3 + $0x178] sm:$0xff] %vm839, %v822
  %888 = vst.msk [vmem:[%s3 + $0x180] sm:$0xff] %vm839, %v823
  %889 = vst.msk [vmem:[%s3 + $0x188] sm:$0xff] %vm839, %v824
  %890 = vst.msk [vmem:[%s3 + $0x190] sm:$0xff] %vm839, %v825
  %891 = vst.msk [vmem:[%s3 + $0x198] sm:$0xff] %vm839, %v826
  %892 = vst.msk [vmem:[%s3 + $0x1a0] sm:$0xff] %vm839, %v827
  %893 = vst.msk [vmem:[%s3 + $0x1a8] sm:$0xff] %vm839, %v828
  %894 = vst.msk [vmem:[%s3 + $0x1b0] sm:$0xff] %vm839, %v829
  %895 = vst.msk [vmem:[%s3 + $0x1b8] sm:$0xff] %vm839, %v830
  %896 = vst.msk [vmem:[%s3 + $0x1c0] sm:$0xff] %vm839, %v831
  %897 = vst.msk [vmem:[%s3 + $0x1c8] sm:$0xff] %vm839, %v832
  %898 = vst.msk [vmem:[%s3 + $0x1d0] sm:$0xff] %vm839, %v833
  %899 = vst.msk [vmem:[%s3 + $0x1d8] sm:$0xff] %vm839, %v834
  %900 = vst.msk [vmem:[%s3 + $0x1e0] sm:$0xff] %vm839, %v835
  %901 = vst.msk [vmem:[%s3 + $0x1e8] sm:$0xff] %vm839, %v836
  %902 = vst.msk [vmem:[%s3 + $0x1f0] sm:$0xff] %vm839, %v837
  %903 = vst.msk [vmem:[%s3 + $0x1f8] sm:$0xff] %vm839, %v838
  // Predicated region
  $region14: #{generator_forward.8} parent=0 // pred_check
    _
  $region15: #{generator_forward.8} parent=0 // pred_check_branch
    %905 = sbr.rel (0) target = $region17
  $region16: #{generator_forward.8} parent=0 // pred_region
    _
  $region17: #{generator_forward.8} parent=0 // pred_fallthru
    _
  // Predicated region
  $region18: #{generator_forward.8} parent=0 // pred_check
    _
  $region19: #{generator_forward.8} parent=0 // pred_check_branch
    %907 = sbr.rel (0) target = $region21
  $region20: #{generator_forward.8} parent=0 // pred_region
    _
  $region21: #{generator_forward.8} parent=0 // pred_fallthru
    _

// kernel: generator_forward.9
$region0: #{generator_forward.9}
  #allocation0 [shape = 'u32[]', space=smem, size = 0x4, offset = 0x4, fixed_abs, tag = 'smem constant byte address 0x4 - core index']
  #allocation1 [shape = 'u32[72,128]{1,0:T(1,128)}', space=vmem, size = 0x9000, scoped, tag = 'internal scratch']
  %s0 = inlined_call_operand.vmem [shape: f32[12,72], index: 0, kind: input, shape index: {}]
  %s1 = inlined_call_operand.vmem [shape: f32[72,2048], index: 1, kind: input, shape index: {}]
  %s2 = inlined_call_operand.vmem [shape: f32[12,1], index: 2, kind: input, shape index: {}]
  %s3 = inlined_call_operand.vmem [shape: f32[12,2048], index: 3, kind: output, shape index: {}]
  %s4 = sld [smem:[#allocation0]]
  $region87: #{generator_forward.9} parent=0
    _
  %s6 = ssub.s32 1, %s4
  %s7 = scalar_select 0, %s6, %s4
  $region1: #{generator_forward.9} parent=0
    #allocation2 [shape = 'u8[294912]{0}', space=vmem, size = 0x48000, scoped, tag = 'input window, operand 1']
    #allocation3 [shape = 'u8[65536]{0}', space=vmem, size = 0x10000, scoped, tag = 'output window, operand 0']
    loop: start=0, step=1, limit=6
    $region2: #{generator_forward.9} parent=1 // loop_pre_header
      _
    $region3: #{generator_forward.9} parent=1 // loop_header
      %s9 = sphi 0, %s13
      %p10 = scmp.ge.s32.totalorder %s9, 6
      %s17 = sphi 0, %s17
      %s19 = sphi 0, %s17
      %s20 = sphi 0, %s19
      %s34 = sphi 0, %s20
      %s40 = sphi 0, %s42
      %s43 = sphi 0, %s40
      %s44 = sphi 0, %s43
      %s60 = sphi 0, %s44
      %s64 = sphi 0, %s64
      %s66 = sphi 0, %s64
      %s67 = sphi 0, %s66
      %s81 = sphi 0, %s67
      %s87 = sphi 0, %s89
      %s90 = sphi 0, %s87
      %s91 = sphi 0, %s90
      %s107 = sphi 0, %s91
    $region4: #{generator_forward.9} parent=1 // loop_header_branch
      %12 = sbr.rel (%p10) target = $region8
    $region5: #{generator_forward.9} parent=1 // loop_body
      %s14 = ssub.s32 %s9, 1
      %s15 = ssub.s32 %s9, 2
      %s16 = sadd.s32 %s9, 1
      %s18 = sadd.s32 %s17, 1
      %p21 = scmp.eq.s32.totalorder %s9, 3
      %p22 = scmp.ne.s32.totalorder %s17, %s19
      %p23 = scmp.eq.s32.totalorder %s9, 0
      %p24 = por %p22, %p23
      %p25 = scmp.ne.s32.totalorder %s17, %s19
      %p26 = scmp.eq.s32.totalorder %s14, 3
      %p27 = por %p25, %p26
      %p28 = scmp.ne.s32.totalorder %s19, %s20
      %p29 = scmp.eq.s32.totalorder %s14, 0
      %p30 = por %p28, %p29
      %p31 = scmp.ne.s32.totalorder %s19, %s20
      %p32 = scmp.eq.s32.totalorder %s15, 3
      %p33 = por %p31, %p32
      %p35 = scmp.ne.s32.totalorder %s20, %s34
      %p36 = scmp.eq.s32.totalorder %s15, 0
      %p37 = por %p35, %p36
      %s38 = ssub.s32 %s9, %s16
      %p39 = scmp.eq.s32.totalorder %s38, 0
      %s41 = sadd.s32 %s40, 1
      %s42 = scalar_select %p39, %s40, %s41
      %p45 = pneg %p39
      %p46 = scmp.eq.s32.totalorder %s9, 3
      %p47 = por %p45, %p46
      %p48 = scmp.ne.s32.totalorder %s40, %s43
      %p49 = scmp.eq.s32.totalorder %s9, 0
      %p50 = por %p48, %p49
      %p51 = scmp.ne.s32.totalorder %s40, %s43
      %p52 = scmp.eq.s32.totalorder %s14, 3
      %p53 = por %p51, %p52
      %p54 = scmp.ne.s32.totalorder %s43, %s44
      %p55 = scmp.eq.s32.totalorder %s14, 0
      %p56 = por %p54, %p55
      %p57 = scmp.ne.s32.totalorder %s43, %s44
      %p58 = scmp.eq.s32.totalorder %s15, 3
      %p59 = por %p57, %p58
      %p61 = scmp.ne.s32.totalorder %s44, %s60
      %p62 = scmp.eq.s32.totalorder %s15, 0
      %p63 = por %p61, %p62
      %s65 = sadd.s32 %s64, 1
      %p68 = scmp.eq.s32.totalorder %s9, 3
      %p69 = scmp.ne.s32.totalorder %s64, %s66
      %p70 = scmp.eq.s32.totalorder %s9, 0
      %p71 = por %p69, %p70
      %p72 = scmp.ne.s32.totalorder %s64, %s66
      %p73 = scmp.eq.s32.totalorder %s14, 3
      %p74 = por %p72, %p73
      %p75 = scmp.ne.s32.totalorder %s66, %s67
      %p76 = scmp.eq.s32.totalorder %s14, 0
      %p77 = por %p75, %p76
      %p78 = scmp.ne.s32.totalorder %s66, %s67
      %p79 = scmp.eq.s32.totalorder %s15, 3
      %p80 = por %p78, %p79
      %p82 = scmp.ne.s32.totalorder %s67, %s81
      %p83 = scmp.eq.s32.totalorder %s15, 0
      %p84 = por %p82, %p83
      %s85 = ssub.s32 %s9, %s16
      %p86 = scmp.eq.s32.totalorder %s85, 0
      %s88 = sadd.s32 %s87, 1
      %s89 = scalar_select %p86, %s87, %s88
      %p92 = pneg %p86
      %p93 = scmp.eq.s32.totalorder %s9, 3
      %p94 = por %p92, %p93
      %p95 = scmp.ne.s32.totalorder %s87, %s90
      %p96 = scmp.eq.s32.totalorder %s9, 0
      %p97 = por %p95, %p96
      %p98 = scmp.ne.s32.totalorder %s87, %s90
      %p99 = scmp.eq.s32.totalorder %s14, 3
      %p100 = por %p98, %p99
      %p101 = scmp.ne.s32.totalorder %s90, %s91
      %p102 = scmp.eq.s32.totalorder %s14, 0
      %p103 = por %p101, %p102
      %p104 = scmp.ne.s32.totalorder %s90, %s91
      %p105 = scmp.eq.s32.totalorder %s15, 3
      %p106 = por %p104, %p105
      %p108 = scmp.ne.s32.totalorder %s91, %s107
      %p109 = scmp.eq.s32.totalorder %s15, 0
      %p110 = por %p108, %p109
      %p111 = scmp.le.s32.totalorder 1, %s9
      %p112 = scmp.lt.s32.totalorder %s9, 5
      %p113 = pnand %p111, %p112
      %p114 = pneg %p113
      // Predicated region
      $region9: #{generator_forward.9} parent=5 // pred_check
        _
      $region10: #{generator_forward.9} parent=5 // pred_check_branch
        %116 = sbr.rel (%p113) target = $region12
      $region11: #{generator_forward.9} parent=5 // pred_region
        %s117 = ssub.s32 %s9, 1
        // Predicated region
        $region13: #{generator_forward.9} parent=11 // pred_check
          %p118 = pneg %p30
        $region14: #{generator_forward.9} parent=11 // pred_check_branch
          %120 = sbr.rel (%p118) target = $region16
        $region15: #{generator_forward.9} parent=11 // pred_region
          _
        $region16: #{generator_forward.9} parent=11 // pred_fallthru
          _
        // Predicated region
        $region17: #{generator_forward.9} parent=11 // pred_check
          %p121 = pneg %p77
        $region18: #{generator_forward.9} parent=11 // pred_check_branch
          %123 = sbr.rel (%p121) target = $region20
        $region19: #{generator_forward.9} parent=11 // pred_region
          _
        $region20: #{generator_forward.9} parent=11 // pred_fallthru
          _
      $region12: #{generator_forward.9} parent=5 // pred_fallthru
        _
      %p124 = scmp.lt.s32.totalorder %s9, 4
      // Predicated region
      $region21: #{generator_forward.9} parent=5 // pred_check
        %p125 = pneg %p124
      $region22: #{generator_forward.9} parent=5 // pred_check_branch
        %127 = sbr.rel (%p125) target = $region24
      $region23: #{generator_forward.9} parent=5 // pred_region
        // Predicated region
        $region25: #{generator_forward.9} parent=23 // pred_check
          %p128 = pneg %p50
        $region26: #{generator_forward.9} parent=23 // pred_check_branch
          %130 = sbr.rel (%p128) target = $region28
        $region27: #{generator_forward.9} parent=23 // pred_region
          %s131 = sand.u32 %s40, 1
          %s132 = sand.u32 %s40, 1
          %s133 = smul.addr %s132, 288
          %s134 = scalar_lea.vmem [#allocation2], %s133
          %s135 = smul.u32 4, %s9
          %s136 = smul.addr %s135, 8
          %s137 = scalar_lea.vmem %s1, %s136
          // Predicated region
          $region29: #{generator_forward.9} parent=27 // pred_check
            _
          $region30: #{generator_forward.9} parent=27 // pred_check_branch
            %139 = sbr.rel (0) target = $region32
          $region31: #{generator_forward.9} parent=27 // pred_region
            // Predicated region
            $region33: #{generator_forward.9} parent=31 // pred_check
              _
            $region34: #{generator_forward.9} parent=31 // pred_check_branch
              %141 = sbr.rel (0) target = $region36
            $region35: #{generator_forward.9} parent=31 // pred_region
              loop: start=0, step=1, limit=1
              $region37: #{generator_forward.9} parent=35 // loop_pre_header
                _
              $region38: #{generator_forward.9} parent=35 // loop_header
                %s143 = sphi 0, %s147
                %p144 = scmp.ge.s32.totalorder %s143, 1
                %s148 = sphi %s137, %s137
                %s149 = sphi %s134, %s134
              $region39: #{generator_forward.9} parent=35 // loop_header_branch
                %146 = sbr.rel (%p144) target = $region43
              $region40: #{generator_forward.9} parent=35 // loop_body
                %v150 = vld [vmem:[%s148] sm:$0xff]
                %151 = vst [vmem:[%s149] sm:$0xff] %v150
                %v152 = vld [vmem:[%s148 + $0x8] sm:$0xff]
                %153 = vst [vmem:[%s149 + $0x8] sm:$0xff] %v152
                %v154 = vld [vmem:[%s148 + $0x10] sm:$0xff]
                %155 = vst [vmem:[%s149 + $0x10] sm:$0xff] %v154
                %v156 = vld [vmem:[%s148 + $0x18] sm:$0xff]
                %157 = vst [vmem:[%s149 + $0x18] sm:$0xff] %v156
                %v158 = vld [vmem:[%s148 + $0x80] sm:$0xff]
                %159 = vst [vmem:[%s149 + $0x20] sm:$0xff] %v158
                %v160 = vld [vmem:[%s148 + $0x88] sm:$0xff]
                %161 = vst [vmem:[%s149 + $0x28] sm:$0xff] %v160
                %v162 = vld [vmem:[%s148 + $0x90] sm:$0xff]
                %163 = vst [vmem:[%s149 + $0x30] sm:$0xff] %v162
                %v164 = vld [vmem:[%s148 + $0x98] sm:$0xff]
                %165 = vst [vmem:[%s149 + $0x38] sm:$0xff] %v164
                %v166 = vld [vmem:[%s148 + $0x100] sm:$0xff]
                %167 = vst [vmem:[%s149 + $0x40] sm:$0xff] %v166
                %v168 = vld [vmem:[%s148 + $0x108] sm:$0xff]
                %169 = vst [vmem:[%s149 + $0x48] sm:$0xff] %v168
                %v170 = vld [vmem:[%s148 + $0x110] sm:$0xff]
                %171 = vst [vmem:[%s149 + $0x50] sm:$0xff] %v170
                %v172 = vld [vmem:[%s148 + $0x118] sm:$0xff]
                %173 = vst [vmem:[%s149 + $0x58] sm:$0xff] %v172
                %v174 = vld [vmem:[%s148 + $0x180] sm:$0xff]
                %175 = vst [vmem:[%s149 + $0x60] sm:$0xff] %v174
                %v176 = vld [vmem:[%s148 + $0x188] sm:$0xff]
                %177 = vst [vmem:[%s149 + $0x68] sm:$0xff] %v176
                %v178 = vld [vmem:[%s148 + $0x190] sm:$0xff]
                %179 = vst [vmem:[%s149 + $0x70] sm:$0xff] %v178
                %v180 = vld [vmem:[%s148 + $0x198] sm:$0xff]
                %181 = vst [vmem:[%s149 + $0x78] sm:$0xff] %v180
                %v182 = vld [vmem:[%s148 + $0x200] sm:$0xff]
                %183 = vst [vmem:[%s149 + $0x80] sm:$0xff] %v182
                %v184 = vld [vmem:[%s148 + $0x208] sm:$0xff]
                %185 = vst [vmem:[%s149 + $0x88] sm:$0xff] %v184
                %v186 = vld [vmem:[%s148 + $0x210] sm:$0xff]
                %187 = vst [vmem:[%s149 + $0x90] sm:$0xff] %v186
                %v188 = vld [vmem:[%s148 + $0x218] sm:$0xff]
                %189 = vst [vmem:[%s149 + $0x98] sm:$0xff] %v188
                %v190 = vld [vmem:[%s148 + $0x280] sm:$0xff]
                %191 = vst [vmem:[%s149 + $0xa0] sm:$0xff] %v190
                %v192 = vld [vmem:[%s148 + $0x288] sm:$0xff]
                %193 = vst [vmem:[%s149 + $0xa8] sm:$0xff] %v192
                %v194 = vld [vmem:[%s148 + $0x290] sm:$0xff]
                %195 = vst [vmem:[%s149 + $0xb0] sm:$0xff] %v194
                %v196 = vld [vmem:[%s148 + $0x298] sm:$0xff]
                %197 = vst [vmem:[%s149 + $0xb8] sm:$0xff] %v196
                %v198 = vld [vmem:[%s148 + $0x300] sm:$0xff]
                %199 = vst [vmem:[%s149 + $0xc0] sm:$0xff] %v198
                %v200 = vld [vmem:[%s148 + $0x308] sm:$0xff]
                %201 = vst [vmem:[%s149 + $0xc8] sm:$0xff] %v200
                %v202 = vld [vmem:[%s148 + $0x310] sm:$0xff]
                %203 = vst [vmem:[%s149 + $0xd0] sm:$0xff] %v202
                %v204 = vld [vmem:[%s148 + $0x318] sm:$0xff]
                %205 = vst [vmem:[%s149 + $0xd8] sm:$0xff] %v204
                %v206 = vld [vmem:[%s148 + $0x380] sm:$0xff]
                %207 = vst [vmem:[%s149 + $0xe0] sm:$0xff] %v206
                %v208 = vld [vmem:[%s148 + $0x388] sm:$0xff]
                %209 = vst [vmem:[%s149 + $0xe8] sm:$0xff] %v208
                %v210 = vld [vmem:[%s148 + $0x390] sm:$0xff]
                %211 = vst [vmem:[%s149 + $0xf0] sm:$0xff] %v210
                %v212 = vld [vmem:[%s148 + $0x398] sm:$0xff]
                %213 = vst [vmem:[%s149 + $0xf8] sm:$0xff] %v212
                %v214 = vld [vmem:[%s148 + $0x400] sm:$0xff]
                %215 = vst [vmem:[%s149 + $0x100] sm:$0xff] %v214
                %v216 = vld [vmem:[%s148 + $0x408] sm:$0xff]
                %217 = vst [vmem:[%s149 + $0x108] sm:$0xff] %v216
                %v218 = vld [vmem:[%s148 + $0x410] sm:$0xff]
                %219 = vst [vmem:[%s149 + $0x110] sm:$0xff] %v218
                %v220 = vld [vmem:[%s148 + $0x418] sm:$0xff]
                %221 = vst [vmem:[%s149 + $0x118] sm:$0xff] %v220
              $region41: #{generator_forward.9} parent=35 // loop_footer
                %s147 = sadd.s32 1, %s143
              $region42: #{generator_forward.9} parent=35 // loop_footer_branch
                %142 = sbr.rel target = $region38
              $region43: #{generator_forward.9} parent=35 // loop_exit
                _
            $region36: #{generator_forward.9} parent=31 // pred_fallthru
              _
            // Predicated region
            $region44: #{generator_forward.9} parent=31 // pred_check
              _
            $region45: #{generator_forward.9} parent=31 // pred_check_branch
              %223 = sbr.rel target = $region47
            $region46: #{generator_forward.9} parent=31 // pred_region
              _
            $region47: #{generator_forward.9} parent=31 // pred_fallthru
              _
          $region32: #{generator_forward.9} parent=27 // pred_fallthru
            _
          %224 = vnop
        $region28: #{generator_forward.9} parent=23 // pred_fallthru
          _
      $region24: #{generator_forward.9} parent=5 // pred_fallthru
        _
      %p225 = scmp.le.s32.totalorder 1, %s9
      %p226 = scmp.lt.s32.totalorder %s9, 5
      %p227 = pnand %p225, %p226
      %p228 = pneg %p227
      // Predicated region
      $region48: #{generator_forward.9} parent=5 // pred_check
        _
      $region49: #{generator_forward.9} parent=5 // pred_check_branch
        %230 = sbr.rel (%p227) target = $region51
      $region50: #{generator_forward.9} parent=5 // pred_region
        %s231 = ssub.s32 %s9, 1
        %s232 = sand.u32 %s43, 1
        %s233 = sand.u32 %s43, 1
        %s234 = smul.addr %s233, 288
        %s235 = scalar_lea.vmem [#allocation2], %s234
        // Predicated region
        $region52: #{generator_forward.9} parent=50 // pred_check
          %p236 = pneg %p56
        $region53: #{generator_forward.9} parent=50 // pred_check_branch
          %238 = sbr.rel (%p236) target = $region55
        $region54: #{generator_forward.9} parent=50 // pred_region
          _
        $region55: #{generator_forward.9} parent=50 // pred_fallthru
          _
        %p239 = pneg %p30
        %p240 = pneg %p27
        %s241 = sand.u32 %s43, 1
        %s242 = sand.u32 %s43, 1
        %s243 = smul.addr %s242, 288
        %s244 = scalar_lea.vmem [#allocation2], %s243
        %p245 = pneg %p56
        %p246 = pneg %p53
        %p247 = pneg %p77
        %p248 = pneg %p74
        %p249 = pneg %p103
        %p250 = pneg %p100
        %s251 = sand.u32 %s90, 1
        %s252 = sand.u32 %s90, 1
        %s253 = smul.addr %s252, 64
        %s254 = scalar_lea.vmem [#allocation3], %s253
        %s255 = smul.u32 4, %s14
        %s256 = smul.u32 4, %s14
        %v257 = vld [vmem:[%s0] sm:$0xff]
        %v258 = vld [vmem:[%s0 + $0x8] sm:$0xf]
        %v259 = vld [vmem:[%s235] sm:$0xff]
        %v260 = vld [vmem:[%s235 + $0x8] sm:$0xff]
        %v261 = vld [vmem:[%s235 + $0x10] sm:$0xff]
        %v262 = vld [vmem:[%s235 + $0x18] sm:$0xff]
        %v263 = vld [vmem:[%s235 + $0x20] sm:$0xff]
        %v264 = vld [vmem:[%s235 + $0x28] sm:$0xff]
        %v265 = vld [vmem:[%s235 + $0x30] sm:$0xff]
        %v266 = vld [vmem:[%s235 + $0x38] sm:$0xff]
        %v267 = vld [vmem:[%s235 + $0x40] sm:$0xff]
        %v268 = vld [vmem:[%s235 + $0x48] sm:$0xff]
        %v269 = vld [vmem:[%s235 + $0x50] sm:$0xff]
        %v270 = vld [vmem:[%s235 + $0x58] sm:$0xff]
        %v271 = vld [vmem:[%s235 + $0x60] sm:$0xff]
        %v272 = vld [vmem:[%s235 + $0x68] sm:$0xff]
        %v273 = vld [vmem:[%s235 + $0x70] sm:$0xff]
        %v274 = vld [vmem:[%s235 + $0x78] sm:$0xff]
        %v275 = vld [vmem:[%s235 + $0x80] sm:$0xff]
        %v276 = vld [vmem:[%s235 + $0x88] sm:$0xff]
        %v277 = vld [vmem:[%s235 + $0x90] sm:$0xff]
        %v278 = vld [vmem:[%s235 + $0x98] sm:$0xff]
        %v279 = vld [vmem:[%s235 + $0xa0] sm:$0xff]
        %v280 = vld [vmem:[%s235 + $0xa8] sm:$0xff]
        %v281 = vld [vmem:[%s235 + $0xb0] sm:$0xff]
        %v282 = vld [vmem:[%s235 + $0xb8] sm:$0xff]
        %v283 = vld [vmem:[%s235 + $0xc0] sm:$0xff]
        %v284 = vld [vmem:[%s235 + $0xc8] sm:$0xff]
        %v285 = vld [vmem:[%s235 + $0xd0] sm:$0xff]
        %v286 = vld [vmem:[%s235 + $0xd8] sm:$0xff]
        %v287 = vld [vmem:[%s235 + $0xe0] sm:$0xff]
        %v288 = vld [vmem:[%s235 + $0xe8] sm:$0xff]
        %v289 = vld [vmem:[%s235 + $0xf0] sm:$0xff]
        %v290 = vld [vmem:[%s235 + $0xf8] sm:$0xff]
        %v291 = vld [vmem:[%s235 + $0x100] sm:$0xff]
        %v292 = vld [vmem:[%s235 + $0x108] sm:$0xff]
        %v293 = vld [vmem:[%s235 + $0x110] sm:$0xff]
        %v294 = vld [vmem:[%s235 + $0x118] sm:$0xff]
        %v295 = vld [vmem:[%s2] sm:$0xff]
        %v296 = vld [vmem:[%s2 + $0x8] sm:$0xf]
        %298 = vset.pattern.permute.xlu0 0
        %299 = vperm.xlu0 %298, %v295
        %v300 = vpop.permute.xlu0 %299
        %303 = vset.pattern.permute.xlu0 0
        %304 = vperm.xlu0 %303, %v296
        %v305 = vpop.permute.xlu0 %304
        %vm307 = vcmask 588800
        %v309 = vsel %vm307, %v257, 0
        %v312 = vsel %vm307, %v258, 0
        %314 = vmatpush.msra.mxu0 0.0
        %315 = vmatpush.msra.mxu0 0.0
        %316 = vmatpush.msra.mxu0 0.0
        %317 = vmatpush.msra.mxu0 0.0
        %318 = vmatpush.msra.mxu0 0.0
        %319 = vmatpush.msra.mxu0 0.0
        %320 = vmatpush.msra.mxu0 0.0
        %321 = vmatpush.msra.mxu0 %v291
        %322 = vmatpush.msra.mxu0 %v287
        %323 = vmatpush.msra.mxu0 %v283
        %324 = vmatpush.msra.mxu0 %v279
        %325 = vmatpush.msra.mxu0 %v275
        %326 = vmatpush.msra.mxu0 %v271
        %327 = vmatpush.msra.mxu0 %v267
        %328 = vmatpush.msra.mxu0 %v263
        %329 = vmatpush.msra.mxu0 %v259
        %330 = vmatmul.f32.gmra.mxu0 %v309
        %v331 = vpop.f32.mrf.mxu0
        %v332 = vadd.f32 %v300, %v331
        %333 = vmatmul.f32.gmra.mxu0 %v312
        %v334 = vpop.f32.mrf.mxu0
        %v335 = vadd.f32 %v305, %v334
        %336 = vdwg.mxu0
        %337 = vmatpush.msra.mxu0 0.0
        %338 = vmatpush.msra.mxu0 0.0
        %339 = vmatpush.msra.mxu0 0.0
        %340 = vmatpush.msra.mxu0 0.0
        %341 = vmatpush.msra.mxu0 0.0
        %342 = vmatpush.msra.mxu0 0.0
        %343 = vmatpush.msra.mxu0 0.0
        %344 = vmatpush.msra.mxu0 %v292
        %345 = vmatpush.msra.mxu0 %v288
        %346 = vmatpush.msra.mxu0 %v284
        %347 = vmatpush.msra.mxu0 %v280
        %348 = vmatpush.msra.mxu0 %v276
        %349 = vmatpush.msra.mxu0 %v272
        %350 = vmatpush.msra.mxu0 %v268
        %351 = vmatpush.msra.mxu0 %v264
        %352 = vmatpush.msra.mxu0 %v260
        %353 = vmatmul.f32.gmra.mxu0 %v309
        %v354 = vpop.f32.mrf.mxu0
        %v355 = vadd.f32 %v300, %v354
        %356 = vmatmul.f32.gmra.mxu0 %v312
        %v357 = vpop.f32.mrf.mxu0
        %v358 = vadd.f32 %v305, %v357
        %359 = vdwg.mxu0
        %360 = vmatpush.msra.mxu0 0.0
        %361 = vmatpush.msra.mxu0 0.0
        %362 = vmatpush.msra.mxu0 0.0
        %363 = vmatpush.msra.mxu0 0.0
        %364 = vmatpush.msra.mxu0 0.0
        %365 = vmatpush.msra.mxu0 0.0
        %366 = vmatpush.msra.mxu0 0.0
        %367 = vmatpush.msra.mxu0 %v293
        %368 = vmatpush.msra.mxu0 %v289
        %369 = vmatpush.msra.mxu0 %v285
        %370 = vmatpush.msra.mxu0 %v281
        %371 = vmatpush.msra.mxu0 %v277
        %372 = vmatpush.msra.mxu0 %v273
        %373 = vmatpush.msra.mxu0 %v269
        %374 = vmatpush.msra.mxu0 %v265
        %375 = vmatpush.msra.mxu0 %v261
        %376 = vmatmul.f32.gmra.mxu0 %v309
        %v377 = vpop.f32.mrf.mxu0
        %v378 = vadd.f32 %v300, %v377
        %379 = vmatmul.f32.gmra.mxu0 %v312
        %v380 = vpop.f32.mrf.mxu0
        %v381 = vadd.f32 %v305, %v380
        %382 = vdwg.mxu0
        %383 = vmatpush.msra.mxu0 0.0
        %384 = vmatpush.msra.mxu0 0.0
        %385 = vmatpush.msra.mxu0 0.0
        %386 = vmatpush.msra.mxu0 0.0
        %387 = vmatpush.msra.mxu0 0.0
        %388 = vmatpush.msra.mxu0 0.0
        %389 = vmatpush.msra.mxu0 0.0
        %390 = vmatpush.msra.mxu0 %v294
        %391 = vmatpush.msra.mxu0 %v290
        %392 = vmatpush.msra.mxu0 %v286
        %393 = vmatpush.msra.mxu0 %v282
        %394 = vmatpush.msra.mxu0 %v278
        %395 = vmatpush.msra.mxu0 %v274
        %396 = vmatpush.msra.mxu0 %v270
        %397 = vmatpush.msra.mxu0 %v266
        %398 = vmatpush.msra.mxu0 %v262
        %399 = vmatmul.f32.gmra.mxu0 %v309
        %v400 = vpop.f32.mrf.mxu0
        %v401 = vadd.f32 %v300, %v400
        %402 = vmatmul.f32.gmra.mxu0 %v312
        %v403 = vpop.f32.mrf.mxu0
        %v404 = vadd.f32 %v305, %v403
        %405 = vdwg.mxu0
        %v406 = vtanh.pop %v332
        %v407 = vtanh.pop %v355
        %v408 = vtanh.pop %v378
        %v409 = vtanh.pop %v401
        %v410 = vtanh.pop %v335
        %v411 = vtanh.pop %v358
        %v412 = vtanh.pop %v381
        %v413 = vtanh.pop %v404
        %414 = vst [vmem:[%s254] sm:$0xff] %v406
        %415 = vst [vmem:[%s254 + $0x8] sm:$0xff] %v407
        %416 = vst [vmem:[%s254 + $0x10] sm:$0xff] %v408
        %417 = vst [vmem:[%s254 + $0x18] sm:$0xff] %v409
        %418 = vst [vmem:[%s254 + $0x20] sm:$0xf] %v410
        %419 = vst [vmem:[%s254 + $0x28] sm:$0xf] %v411
        %420 = vst [vmem:[%s254 + $0x30] sm:$0xf] %v412
        %421 = vst [vmem:[%s254 + $0x38] sm:$0xf] %v413
        %s422 = sand.u32 %s90, 1
        %s423 = sand.u32 %s90, 1
        %s424 = smul.addr %s423, 64
        %s425 = scalar_lea.vmem [#allocation3], %s424
        // Predicated region
        $region56: #{generator_forward.9} parent=50 // pred_check
          %p426 = pneg %p100
        $region57: #{generator_forward.9} parent=50 // pred_check_branch
          %428 = sbr.rel (%p426) target = $region59
        $region58: #{generator_forward.9} parent=50 // pred_region
          %s429 = smul.u32 4, %s14
          %s430 = smul.addr %s429, 8
          %s431 = scalar_lea.vmem %s3, %s430
          // Predicated region
          $region60: #{generator_forward.9} parent=58 // pred_check
            _
          $region61: #{generator_forward.9} parent=58 // pred_check_branch
            %433 = sbr.rel (0) target = $region63
          $region62: #{generator_forward.9} parent=58 // pred_region
            // Predicated region
            $region64: #{generator_forward.9} parent=62 // pred_check
              _
            $region65: #{generator_forward.9} parent=62 // pred_check_branch
              %435 = sbr.rel (0) target = $region67
            $region66: #{generator_forward.9} parent=62 // pred_region
              loop: start=0, step=1, limit=1
              $region68: #{generator_forward.9} parent=66 // loop_pre_header
                _
              $region69: #{generator_forward.9} parent=66 // loop_header
                %s437 = sphi 0, %s441
                %p438 = scmp.ge.s32.totalorder %s437, 1
                %s442 = sphi %s425, %s425
                %s443 = sphi %s431, %s431
              $region70: #{generator_forward.9} parent=66 // loop_header_branch
                %440 = sbr.rel (%p438) target = $region74
              $region71: #{generator_forward.9} parent=66 // loop_body
                %v444 = vld [vmem:[%s442] sm:$0xff]
                %445 = vst [vmem:[%s443] sm:$0xff] %v444
                %v446 = vld [vmem:[%s442 + $0x8] sm:$0xff]
                %447 = vst [vmem:[%s443 + $0x8] sm:$0xff] %v446
                %v448 = vld [vmem:[%s442 + $0x10] sm:$0xff]
                %449 = vst [vmem:[%s443 + $0x10] sm:$0xff] %v448
                %v450 = vld [vmem:[%s442 + $0x18] sm:$0xff]
                %451 = vst [vmem:[%s443 + $0x18] sm:$0xff] %v450
                %v452 = vld [vmem:[%s442 + $0x20] sm:$0xff]
                %453 = vst [vmem:[%s443 + $0x80] sm:$0xff] %v452
                %v454 = vld [vmem:[%s442 + $0x28] sm:$0xff]
                %455 = vst [vmem:[%s443 + $0x88] sm:$0xff] %v454
                %v456 = vld [vmem:[%s442 + $0x30] sm:$0xff]
                %457 = vst [vmem:[%s443 + $0x90] sm:$0xff] %v456
                %v458 = vld [vmem:[%s442 + $0x38] sm:$0xff]
                %459 = vst [vmem:[%s443 + $0x98] sm:$0xff] %v458
              $region72: #{generator_forward.9} parent=66 // loop_footer
                %s441 = sadd.s32 1, %s437
              $region73: #{generator_forward.9} parent=66 // loop_footer_branch
                %436 = sbr.rel target = $region69
              $region74: #{generator_forward.9} parent=66 // loop_exit
                _
            $region67: #{generator_forward.9} parent=62 // pred_fallthru
              _
            // Predicated region
            $region75: #{generator_forward.9} parent=62 // pred_check
              _
            $region76: #{generator_forward.9} parent=62 // pred_check_branch
              %461 = sbr.rel target = $region78
            $region77: #{generator_forward.9} parent=62 // pred_region
              _
            $region78: #{generator_forward.9} parent=62 // pred_fallthru
              _
          $region63: #{generator_forward.9} parent=58 // pred_fallthru
            _
          %462 = vnop
        $region59: #{generator_forward.9} parent=50 // pred_fallthru
          _
      $region51: #{generator_forward.9} parent=5 // pred_fallthru
        _
      %p463 = scmp.le.s32.totalorder 2, %s9
      // Predicated region
      $region79: #{generator_forward.9} parent=5 // pred_check
        %p464 = pneg %p463
      $region80: #{generator_forward.9} parent=5 // pred_check_branch
        %466 = sbr.rel (%p464) target = $region82
      $region81: #{generator_forward.9} parent=5 // pred_region
        %s467 = ssub.s32 %s9, 2
        // Predicated region
        $region83: #{generator_forward.9} parent=81 // pred_check
          %p468 = pneg %p106
        $region84: #{generator_forward.9} parent=81 // pred_check_branch
          %470 = sbr.rel (%p468) target = $region86
        $region85: #{generator_forward.9} parent=81 // pred_region
          %s471 = sand.u32 %s91, 1
          %s472 = sand.u32 %s91, 1
          %s473 = smul.addr %s472, 64
          %s474 = scalar_lea.vmem [#allocation3], %s473
        $region86: #{generator_forward.9} parent=81 // pred_fallthru
          _
      $region82: #{generator_forward.9} parent=5 // pred_fallthru
        _
    $region6: #{generator_forward.9} parent=1 // loop_footer
      %s13 = sadd.s32 1, %s9
    $region7: #{generator_forward.9} parent=1 // loop_footer_branch
      %8 = sbr.rel target = $region3
    $region8: #{generator_forward.9} parent=1 // loop_exit
      _

</llo_original>
